<compile_context>
chip_gen: v6e
topology: v6e:2x2x1
jax: 0.10.0
libtpu: 0.0.40
codegen_flags: <defaults>
</compile_context>

<pallas_src>
import functools

import jax
import jax.numpy as jnp
from jax.experimental import pallas as pl
from jax.experimental.pallas import tpu as pltpu


# ---------------------------------------------------------------------------
# Kernel 1: fused global average + max pooling over the spatial (lane) axis.
# Block: x (1, tc, S)  ->  avg/max (1, tc, 1)
# ---------------------------------------------------------------------------
def _pool_kernel(x_ref, avg_ref, max_ref, *, inv_s):
    blk = x_ref[0]                                            # (tc, S)
    avg_ref[0] = jnp.sum(blk, axis=-1, keepdims=True) * inv_s  # (tc, 1)
    max_ref[0] = jnp.max(blk, axis=-1, keepdims=True)          # (tc, 1)


# ---------------------------------------------------------------------------
# Kernel 2: shared MLP (Conv1x1 -> ReLU -> folded Conv_DW -> Conv1x1) applied to
# both pooled vectors, summed, then softmax over channels.  All tensors are tiny
# ((B, C), (C, Cr), ...) so the whole call is a single VMEM-resident block.
# ---------------------------------------------------------------------------
def _mlp_softmax_kernel(avg_ref, max_ref, w1_ref, a1_ref, b1_ref,
                        pw_ref, a2_ref, b2_ref, w2_ref, attn_ref):
    def shared_mlp(v):                                        # v: (B, C)
        h = jnp.dot(v, w1_ref[...], preferred_element_type=jnp.float32)
        h = jnp.maximum(h, 0.0)                               # ReLU after 1x1 conv
        # Conv_DW on a 1x1 map: depthwise center tap * BN folded to scale/shift
        h = jnp.maximum(h * a1_ref[...] + b1_ref[...], 0.0)
        # pointwise 1x1 + BN + ReLU
        h = jnp.dot(h, pw_ref[...], preferred_element_type=jnp.float32)
        h = jnp.maximum(h * a2_ref[...] + b2_ref[...], 0.0)
        return jnp.dot(h, w2_ref[...], preferred_element_type=jnp.float32)

    logits = shared_mlp(avg_ref[...]) + shared_mlp(max_ref[...])   # (B, C)
    m = jnp.max(logits, axis=-1, keepdims=True)                    # softmax over channels
    e = jnp.exp(logits - m)
    attn_ref[...] = (e / jnp.sum(e, axis=-1, keepdims=True)).astype(attn_ref.dtype)


# ---------------------------------------------------------------------------
# Kernel 3: out = x * attn (per-channel scale broadcast over the spatial lanes).
# Block: x (1, tc, S), attn (1, tc, 1) -> out (1, tc, S)  (lane-dense stores)
# ---------------------------------------------------------------------------
def _scale_kernel(x_ref, attn_ref, o_ref):
    o_ref[0] = x_ref[0] * attn_ref[0]                         # (tc,S) * (tc,1)


def _pick_channel_tile(C, S, itemsize=4, budget_bytes=4 << 20):
    """Channel-slab height: full C if it fits the per-block budget, else a
    multiple of 8 so one (tc, S) f32 slab stays <= ~4 MiB (VMEM friendly on v7x)."""
    if C * S * itemsize <= budget_bytes:
        return C
    tc = (budget_bytes // (S * itemsize)) // 8 * 8
    return int(max(8, min(tc, 512)))


def ca_wx_pallas(x, params):
    """x: (B, C, H, W) float32.  params: folded sharedMLP parameters."""
    w1, a1, b1, pw, a2, b2, w2 = params
    B, C, H, W = x.shape
    S = H * W
    xs = x.reshape(B, C, S)

    tc = _pick_channel_tile(C, S)
    n_c = pl.cdiv(C, tc)

    # --- fused global avg + max pooling (single pass over x) ----------------
    pooled = jax.ShapeDtypeStruct((B, C, 1), jnp.float32)
    avg_p, max_p = pl.pallas_call(
        functools.partial(_pool_kernel, inv_s=1.0 / S),
        grid=(B, n_c),
        in_specs=[pl.BlockSpec((1, tc, S), lambda b, c: (b, c, 0))],
        out_specs=(pl.BlockSpec((1, tc, 1), lambda b, c: (b, c, 0)),
                   pl.BlockSpec((1, tc, 1), lambda b, c: (b, c, 0))),
        out_shape=(pooled, pooled),
        compiler_params=pltpu.CompilerParams(
            dimension_semantics=("parallel", "parallel")),
    )(xs)

    # --- shared MLP + softmax over channels (tiny; one block) ---------------
    attn = pl.pallas_call(
        _mlp_softmax_kernel,
        out_shape=jax.ShapeDtypeStruct((B, C), jnp.float32),
    )(avg_p.reshape(B, C), max_p.reshape(B, C), w1, a1, b1, pw, a2, b2, w2)

    # --- broadcast-scale the input -------------------------------------------
    out = pl.pallas_call(
        _scale_kernel,
        grid=(B, n_c),
        in_specs=[pl.BlockSpec((1, tc, S), lambda b, c: (b, c, 0)),
                  pl.BlockSpec((1, tc, 1), lambda b, c: (b, c, 0))],
        out_specs=pl.BlockSpec((1, tc, S), lambda b, c: (b, c, 0)),
        out_shape=jax.ShapeDtypeStruct((B, C, S), x.dtype),
        compiler_params=pltpu.CompilerParams(
            dimension_semantics=("parallel", "parallel")),
    )(xs, attn.reshape(B, C, 1).astype(x.dtype))

    return out.reshape(B, C, H, W)


# ---------------------------------------------------------------------------
# Pure-JAX reference of the same math (for correctness checking).
# ---------------------------------------------------------------------------
def ca_wx_reference(x, params):
    w1, a1, b1, pw, a2, b2, w2 = params
    v_avg = x.mean(axis=(2, 3))                               # (B, C)
    v_max = x.max(axis=(2, 3))

    def shared_mlp(v):
        h = jnp.maximum(v @ w1, 0.0)
        h = jnp.maximum(h * a1 + b1, 0.0)
        h = jnp.maximum((h @ pw) * a2 + b2, 0.0)
        return h @ w2

    logits = shared_mlp(v_avg) + shared_mlp(v_max)
    attn = jax.nn.softmax(logits, axis=-1)
    return x * attn[:, :, None, None]


if __name__ == "__main__":
    # Small shapes consistent with the module: batch=2, channels=128 (ratio 16 ->
    # hidden 8, lane-aligned), spatial 16x16.
    B, C, H, W = 2, 128, 16, 16
    ratio = 16
    Cr = C // ratio

    key = jax.random.PRNGKey(0)
    ks = jax.random.split(key, 10)

    x = jax.random.normal(ks[0], (B, C, H, W), dtype=jnp.float32)

    # Synthetic parameters.  Conv weights are stored transposed for the v @ W
    # convention; Conv_DW's dw-center tap and both eval-mode BatchNorms are
    # pre-folded into per-channel scale (a1/a2) and shift (b1/b2).
    w1 = jax.random.normal(ks[1], (C, Cr), jnp.float32) * 0.1           # 1x1 conv C -> C/r
    dw_center = jax.random.normal(ks[2], (1, Cr), jnp.float32) * 0.5    # depthwise 3x3 center tap
    bn1_scale = 1.0 + 0.1 * jax.random.normal(ks[3], (1, Cr), jnp.float32)
    bn1_shift = 0.1 * jax.random.normal(ks[4], (1, Cr), jnp.float32)
    a1 = dw_center * bn1_scale
    b1 = bn1_shift
    pw = jax.random.normal(ks[5], (Cr, Cr), jnp.float32) * 0.3          # pointwise 1x1 C/r -> C/r
    a2 = 1.0 + 0.1 * jax.random.normal(ks[6], (1, Cr), jnp.float32)
    b2 = 0.1 * jax.random.normal(ks[7], (1, Cr), jnp.float32)
    w2 = jax.random.normal(ks[8], (Cr, C), jnp.float32) * 0.1           # 1x1 conv C/r -> C

    params = (w1, a1, b1, pw, a2, b2, w2)

    run = jax.jit(ca_wx_pallas)
    out = run(x, params)
    jax.block_until_ready(out)

    ref = ca_wx_reference(x, params)
    assert out.shape == ref.shape
    assert jnp.allclose(out, ref, atol=1e-5, rtol=1e-4), "mismatch vs reference"

    print("KERNEL_OK")
</pallas_src>

<mosaic_0001>
module attributes {stable_mosaic.version = 11 : i64} {
  func.func @_pool_kernel(%arg0: i32, %arg1: i32, %arg2: memref<1x128x256xf32, #tpu.memory_space<vmem>>, %arg3: memref<1x128x1xf32, #tpu.memory_space<vmem>>, %arg4: memref<1x128x1xf32, #tpu.memory_space<vmem>>) attributes {dimension_semantics = [#tpu.dimension_semantics<parallel>, #tpu.dimension_semantics<parallel>], iteration_bounds = array<i64: 2, 1>, scalar_prefetch = 0 : i64, scratch_operands = 0 : i64, tpu.core_type = #tpu.core_type<tc>, window_params = [{transform_indices = @transform_0, window_bounds = array<i64: 1, 128, 256>}, {transform_indices = @transform_1, window_bounds = array<i64: 1, 128, 1>}, {transform_indices = @transform_2, window_bounds = array<i64: 1, 128, 1>}]} {
    %c0 = arith.constant 0 : index
    %c0_0 = arith.constant 0 : index
    %c0_1 = arith.constant 0 : index
    %0 = vector.load %arg2[%c0, %c0_0, %c0_1] : memref<1x128x256xf32, #tpu.memory_space<vmem>>, vector<1x128x256xf32>
    %1 = vector.shape_cast %0 : vector<1x128x256xf32> to vector<128x256xf32>
    %cst = arith.constant dense<0.000000e+00> : vector<128xf32>
    %2 = vector.multi_reduction <add>, %1, %cst [1] : vector<128x256xf32> to vector<128xf32>
    %3 = vector.shape_cast %2 : vector<128xf32> to vector<128x1xf32>
    %cst_2 = arith.constant 3.906250e-03 : f32
    %4 = vector.broadcast %cst_2 : f32 to vector<128x1xf32>
    %5 = arith.mulf %3, %4 : vector<128x1xf32>
    %c0_3 = arith.constant 0 : index
    %c0_4 = arith.constant 0 : index
    %c0_5 = arith.constant 0 : index
    %6 = vector.load %arg3[%c0_3, %c0_4, %c0_5] : memref<1x128x1xf32, #tpu.memory_space<vmem>>, vector<1x128x1xf32>
    %7 = vector.shape_cast %6 : vector<1x128x1xf32> to vector<128x1xf32>
    %8 = vector.shape_cast %5 : vector<128x1xf32> to vector<1x128x1xf32>
    tpu.vector_store %arg3[%c0_3, %c0_4, %c0_5], %8 {strides = array<i32>} : memref<1x128x1xf32, #tpu.memory_space<vmem>>, vector<1x128x1xf32>,
    %cst_6 = arith.constant dense<0xFF800000> : vector<128xf32>
    %9 = vector.multi_reduction <maximumf>, %1, %cst_6 [1] : vector<128x256xf32> to vector<128xf32>
    %10 = vector.shape_cast %9 : vector<128xf32> to vector<128x1xf32>
    %c0_7 = arith.constant 0 : index
    %c0_8 = arith.constant 0 : index
    %c0_9 = arith.constant 0 : index
    %11 = vector.load %arg4[%c0_7, %c0_8, %c0_9] : memref<1x128x1xf32, #tpu.memory_space<vmem>>, vector<1x128x1xf32>
    %12 = vector.shape_cast %11 : vector<1x128x1xf32> to vector<128x1xf32>
    %13 = vector.shape_cast %10 : vector<128x1xf32> to vector<1x128x1xf32>
    tpu.vector_store %arg4[%c0_7, %c0_8, %c0_9], %13 {strides = array<i32>} : memref<1x128x1xf32, #tpu.memory_space<vmem>>, vector<1x128x1xf32>,
    return
  }
  func.func @transform_0(%arg0: i32, %arg1: i32) -> (i32, i32, i32) {
    %c0_i32 = arith.constant 0 : i32
    %c0_i32_0 = arith.constant 0 : i32
    return %arg0, %arg1, %c0_i32 : i32, i32, i32
  }
  func.func @transform_1(%arg0: i32, %arg1: i32) -> (i32, i32, i32) {
    %c0_i32 = arith.constant 0 : i32
    %c0_i32_0 = arith.constant 0 : i32
    return %arg0, %arg1, %c0_i32 : i32, i32, i32
  }
  func.func @transform_2(%arg0: i32, %arg1: i32) -> (i32, i32, i32) {
    %c0_i32 = arith.constant 0 : i32
    %c0_i32_0 = arith.constant 0 : i32
    return %arg0, %arg1, %c0_i32 : i32, i32, i32
  }
}

module attributes {stable_mosaic.version = 11 : i64} {
  func.func @_scale_kernel(%arg0: i32, %arg1: i32, %arg2: memref<1x128x256xf32, #tpu.memory_space<vmem>>, %arg3: memref<1x128x1xf32, #tpu.memory_space<vmem>>, %arg4: memref<1x128x256xf32, #tpu.memory_space<vmem>>) attributes {dimension_semantics = [#tpu.dimension_semantics<parallel>, #tpu.dimension_semantics<parallel>], iteration_bounds = array<i64: 2, 1>, scalar_prefetch = 0 : i64, scratch_operands = 0 : i64, tpu.core_type = #tpu.core_type<tc>, window_params = [{transform_indices = @transform_0, window_bounds = array<i64: 1, 128, 256>}, {transform_indices = @transform_1, window_bounds = array<i64: 1, 128, 1>}, {transform_indices = @transform_2, window_bounds = array<i64: 1, 128, 256>}]} {
    %c0 = arith.constant 0 : index
    %c0_0 = arith.constant 0 : index
    %c0_1 = arith.constant 0 : index
    %0 = vector.load %arg2[%c0, %c0_0, %c0_1] : memref<1x128x256xf32, #tpu.memory_space<vmem>>, vector<1x128x256xf32>
    %1 = vector.shape_cast %0 : vector<1x128x256xf32> to vector<128x256xf32>
    %c0_2 = arith.constant 0 : index
    %c0_3 = arith.constant 0 : index
    %c0_4 = arith.constant 0 : index
    %2 = vector.load %arg3[%c0_2, %c0_3, %c0_4] : memref<1x128x1xf32, #tpu.memory_space<vmem>>, vector<1x128x1xf32>
    %3 = vector.shape_cast %2 : vector<1x128x1xf32> to vector<128x1xf32>
    %4 = vector.broadcast %3 : vector<128x1xf32> to vector<128x256xf32>
    %5 = arith.mulf %1, %4 : vector<128x256xf32>
    %c0_5 = arith.constant 0 : index
    %c0_6 = arith.constant 0 : index
    %c0_7 = arith.constant 0 : index
    %6 = vector.load %arg4[%c0_5, %c0_6, %c0_7] : memref<1x128x256xf32, #tpu.memory_space<vmem>>, vector<1x128x256xf32>
    %7 = vector.shape_cast %6 : vector<1x128x256xf32> to vector<128x256xf32>
    %8 = vector.shape_cast %5 : vector<128x256xf32> to vector<1x128x256xf32>
    tpu.vector_store %arg4[%c0_5, %c0_6, %c0_7], %8 {strides = array<i32>} : memref<1x128x256xf32, #tpu.memory_space<vmem>>, vector<1x128x256xf32>,
    return
  }
  func.func @transform_0(%arg0: i32, %arg1: i32) -> (i32, i32, i32) {
    %c0_i32 = arith.constant 0 : i32
    %c0_i32_0 = arith.constant 0 : i32
    return %arg0, %arg1, %c0_i32 : i32, i32, i32
  }
  func.func @transform_1(%arg0: i32, %arg1: i32) -> (i32, i32, i32) {
    %c0_i32 = arith.constant 0 : i32
    %c0_i32_0 = arith.constant 0 : i32
    return %arg0, %arg1, %c0_i32 : i32, i32, i32
  }
  func.func @transform_2(%arg0: i32, %arg1: i32) -> (i32, i32, i32) {
    %c0_i32 = arith.constant 0 : i32
    %c0_i32_0 = arith.constant 0 : i32
    return %arg0, %arg1, %c0_i32 : i32, i32, i32
  }
}

module attributes {stable_mosaic.version = 11 : i64} {
  func.func @_mlp_softmax_kernel(%arg0: memref<2x128xf32, #tpu.memory_space<vmem>>, %arg1: memref<2x128xf32, #tpu.memory_space<vmem>>, %arg2: memref<128x8xf32, #tpu.memory_space<vmem>>, %arg3: memref<1x8xf32, #tpu.memory_space<vmem>>, %arg4: memref<1x8xf32, #tpu.memory_space<vmem>>, %arg5: memref<8x8xf32, #tpu.memory_space<vmem>>, %arg6: memref<1x8xf32, #tpu.memory_space<vmem>>, %arg7: memref<1x8xf32, #tpu.memory_space<vmem>>, %arg8: memref<8x128xf32, #tpu.memory_space<vmem>>, %arg9: memref<2x128xf32, #tpu.memory_space<vmem>>) attributes {dimension_semantics = [], scalar_prefetch = 0 : i64, scratch_operands = 0 : i64, tpu.core_type = #tpu.core_type<tc>} {
    %c0 = arith.constant 0 : index
    %c0_0 = arith.constant 0 : index
    %0 = vector.load %arg0[%c0, %c0_0] : memref<2x128xf32, #tpu.memory_space<vmem>>, vector<2x128xf32>
    %c0_1 = arith.constant 0 : index
    %c0_2 = arith.constant 0 : index
    %1 = vector.load %arg2[%c0_1, %c0_2] : memref<128x8xf32, #tpu.memory_space<vmem>>, vector<128x8xf32>
    %cst = arith.constant dense<0.000000e+00> : vector<2x8xf32>
    %2 = tpu.matmul %0, %1, %cst {dimension_numbers = #tpu.dot_dimension_numbers<[1], [0], [0], [1], [0, 0, 1, 1], [], []>} : vector<2x128xf32>, vector<128x8xf32>, vector<2x8xf32> -> vector<2x8xf32>
    %cst_3 = arith.constant 0.000000e+00 : f32
    %3 = vector.broadcast %cst_3 : f32 to vector<2x8xf32>
    %4 = arith.maximumf %2, %3 : vector<2x8xf32>
    %c0_4 = arith.constant 0 : index
    %c0_5 = arith.constant 0 : index
    %5 = vector.load %arg3[%c0_4, %c0_5] : memref<1x8xf32, #tpu.memory_space<vmem>>, vector<1x8xf32>
    %6 = vector.broadcast %5 : vector<1x8xf32> to vector<2x8xf32>
    %7 = arith.mulf %4, %6 : vector<2x8xf32>
    %c0_6 = arith.constant 0 : index
    %c0_7 = arith.constant 0 : index
    %8 = vector.load %arg4[%c0_6, %c0_7] : memref<1x8xf32, #tpu.memory_space<vmem>>, vector<1x8xf32>
    %9 = vector.broadcast %8 : vector<1x8xf32> to vector<2x8xf32>
    %10 = arith.addf %7, %9 : vector<2x8xf32>
    %cst_8 = arith.constant 0.000000e+00 : f32
    %11 = vector.broadcast %cst_8 : f32 to vector<2x8xf32>
    %12 = arith.maximumf %10, %11 : vector<2x8xf32>
    %c0_9 = arith.constant 0 : index
    %c0_10 = arith.constant 0 : index
    %13 = vector.load %arg5[%c0_9, %c0_10] : memref<8x8xf32, #tpu.memory_space<vmem>>, vector<8x8xf32>
    %cst_11 = arith.constant dense<0.000000e+00> : vector<2x8xf32>
    %14 = tpu.matmul %12, %13, %cst_11 {dimension_numbers = #tpu.dot_dimension_numbers<[1], [0], [0], [1], [0, 0, 1, 1], [], []>} : vector<2x8xf32>, vector<8x8xf32>, vector<2x8xf32> -> vector<2x8xf32>
    %c0_12 = arith.constant 0 : index
    %c0_13 = arith.constant 0 : index
    %15 = vector.load %arg6[%c0_12, %c0_13] : memref<1x8xf32, #tpu.memory_space<vmem>>, vector<1x8xf32>
    %16 = vector.broadcast %15 : vector<1x8xf32> to vector<2x8xf32>
    %17 = arith.mulf %14, %16 : vector<2x8xf32>
    %c0_14 = arith.constant 0 : index
    %c0_15 = arith.constant 0 : index
    %18 = vector.load %arg7[%c0_14, %c0_15] : memref<1x8xf32, #tpu.memory_space<vmem>>, vector<1x8xf32>
    %19 = vector.broadcast %18 : vector<1x8xf32> to vector<2x8xf32>
    %20 = arith.addf %17, %19 : vector<2x8xf32>
    %cst_16 = arith.constant 0.000000e+00 : f32
    %21 = vector.broadcast %cst_16 : f32 to vector<2x8xf32>
    %22 = arith.maximumf %20, %21 : vector<2x8xf32>
    %c0_17 = arith.constant 0 : index
    %c0_18 = arith.constant 0 : index
    %23 = vector.load %arg8[%c0_17, %c0_18] : memref<8x128xf32, #tpu.memory_space<vmem>>, vector<8x128xf32>
    %cst_19 = arith.constant dense<0.000000e+00> : vector<2x128xf32>
    %24 = tpu.matmul %22, %23, %cst_19 {dimension_numbers = #tpu.dot_dimension_numbers<[1], [0], [0], [1], [0, 0, 1, 1], [], []>} : vector<2x8xf32>, vector<8x128xf32>, vector<2x128xf32> -> vector<2x128xf32>
    %c0_20 = arith.constant 0 : index
    %c0_21 = arith.constant 0 : index
    %25 = vector.load %arg1[%c0_20, %c0_21] : memref<2x128xf32, #tpu.memory_space<vmem>>, vector<2x128xf32>
    %c0_22 = arith.constant 0 : index
    %c0_23 = arith.constant 0 : index
    %26 = vector.load %arg2[%c0_22, %c0_23] : memref<128x8xf32, #tpu.memory_space<vmem>>, vector<128x8xf32>
    %cst_24 = arith.constant dense<0.000000e+00> : vector<2x8xf32>
    %27 = tpu.matmul %25, %26, %cst_24 {dimension_numbers = #tpu.dot_dimension_numbers<[1], [0], [0], [1], [0, 0, 1, 1], [], []>} : vector<2x128xf32>, vector<128x8xf32>, vector<2x8xf32> -> vector<2x8xf32>
    %cst_25 = arith.constant 0.000000e+00 : f32
    %28 = vector.broadcast %cst_25 : f32 to vector<2x8xf32>
    %29 = arith.maximumf %27, %28 : vector<2x8xf32>
    %c0_26 = arith.constant 0 : index
    %c0_27 = arith.constant 0 : index
    %30 = vector.load %arg3[%c0_26, %c0_27] : memref<1x8xf32, #tpu.memory_space<vmem>>, vector<1x8xf32>
    %31 = vector.broadcast %30 : vector<1x8xf32> to vector<2x8xf32>
    %32 = arith.mulf %29, %31 : vector<2x8xf32>
    %c0_28 = arith.constant 0 : index
    %c0_29 = arith.constant 0 : index
    %33 = vector.load %arg4[%c0_28, %c0_29] : memref<1x8xf32, #tpu.memory_space<vmem>>, vector<1x8xf32>
    %34 = vector.broadcast %33 : vector<1x8xf32> to vector<2x8xf32>
    %35 = arith.addf %32, %34 : vector<2x8xf32>
    %cst_30 = arith.constant 0.000000e+00 : f32
    %36 = vector.broadcast %cst_30 : f32 to vector<2x8xf32>
    %37 = arith.maximumf %35, %36 : vector<2x8xf32>
    %c0_31 = arith.constant 0 : index
    %c0_32 = arith.constant 0 : index
    %38 = vector.load %arg5[%c0_31, %c0_32] : memref<8x8xf32, #tpu.memory_space<vmem>>, vector<8x8xf32>
    %cst_33 = arith.constant dense<0.000000e+00> : vector<2x8xf32>
    %39 = tpu.matmul %37, %38, %cst_33 {dimension_numbers = #tpu.dot_dimension_numbers<[1], [0], [0], [1], [0, 0, 1, 1], [], []>} : vector<2x8xf32>, vector<8x8xf32>, vector<2x8xf32> -> vector<2x8xf32>
    %c0_34 = arith.constant 0 : index
    %c0_35 = arith.constant 0 : index
    %40 = vector.load %arg6[%c0_34, %c0_35] : memref<1x8xf32, #tpu.memory_space<vmem>>, vector<1x8xf32>
    %41 = vector.broadcast %40 : vector<1x8xf32> to vector<2x8xf32>
    %42 = arith.mulf %39, %41 : vector<2x8xf32>
    %c0_36 = arith.constant 0 : index
    %c0_37 = arith.constant 0 : index
    %43 = vector.load %arg7[%c0_36, %c0_37] : memref<1x8xf32, #tpu.memory_space<vmem>>, vector<1x8xf32>
    %44 = vector.broadcast %43 : vector<1x8xf32> to vector<2x8xf32>
    %45 = arith.addf %42, %44 : vector<2x8xf32>
    %cst_38 = arith.constant 0.000000e+00 : f32
    %46 = vector.broadcast %cst_38 : f32 to vector<2x8xf32>
    %47 = arith.maximumf %45, %46 : vector<2x8xf32>
    %c0_39 = arith.constant 0 : index
    %c0_40 = arith.constant 0 : index
    %48 = vector.load %arg8[%c0_39, %c0_40] : memref<8x128xf32, #tpu.memory_space<vmem>>, vector<8x128xf32>
    %cst_41 = arith.constant dense<0.000000e+00> : vector<2x128xf32>
    %49 = tpu.matmul %47, %48, %cst_41 {dimension_numbers = #tpu.dot_dimension_numbers<[1], [0], [0], [1], [0, 0, 1, 1], [], []>} : vector<2x8xf32>, vector<8x128xf32>, vector<2x128xf32> -> vector<2x128xf32>
    %50 = arith.addf %24, %49 : vector<2x128xf32>
    %cst_42 = arith.constant dense<0xFF800000> : vector<2xf32>
    %51 = vector.multi_reduction <maximumf>, %50, %cst_42 [1] : vector<2x128xf32> to vector<2xf32>
    %52 = vector.shape_cast %51 : vector<2xf32> to vector<2x1xf32>
    %53 = vector.broadcast %52 : vector<2x1xf32> to vector<2x128xf32>
    %54 = arith.subf %50, %53 : vector<2x128xf32>
    %55 = math.exp %54 : vector<2x128xf32>
    %cst_43 = arith.constant dense<0.000000e+00> : vector<2xf32>
    %56 = vector.multi_reduction <add>, %55, %cst_43 [1] : vector<2x128xf32> to vector<2xf32>
    %57 = vector.shape_cast %56 : vector<2xf32> to vector<2x1xf32>
    %58 = vector.broadcast %57 : vector<2x1xf32> to vector<2x128xf32>
    %59 = arith.divf %55, %58 : vector<2x128xf32>
    %c0_44 = arith.constant 0 : index
    %c0_45 = arith.constant 0 : index
    %60 = vector.load %arg9[%c0_44, %c0_45] : memref<2x128xf32, #tpu.memory_space<vmem>>, vector<2x128xf32>
    tpu.vector_store %arg9[%c0_44, %c0_45], %59 {strides = array<i32>} : memref<2x128xf32, #tpu.memory_space<vmem>>, vector<2x128xf32>,
    return
  }
}

</mosaic_0001>

<llo_original>
// kernel: ca_wx_pallas.3
$region0: #{ca_wx_pallas.3}
  #allocation0 [shape = 'u32[]', space=smem, size = 0x4, offset = 0x4, fixed_abs, tag = 'smem constant byte address 0x4 - core index']
  #allocation1 [shape = 'u32[144,128]{1,0:T(1,128)}', space=vmem, size = 0x12000, scoped, tag = 'internal scratch']
  %s0 = inlined_call_operand.vmem [shape: f32[2,128,256], index: 0, kind: input, shape index: {}]
  %s1 = inlined_call_operand.vmem [shape: f32[2,128,1], index: 1, kind: output, shape index: {0}]
  %s2 = inlined_call_operand.vmem [shape: f32[2,128,1], index: 2, kind: output, shape index: {1}]
  %3 = xla_tuple %s1, %s2
  %s4 = sld [smem:[#allocation0]]
  $region45: #{ca_wx_pallas.3} parent=0
    _
  %s6 = ssub.s32 1, %s4
  %s7 = scalar_select 0, %s6, %s4
  loop: start=0, step=1, limit=4
  $region2: #{ca_wx_pallas.3} parent=0 // loop_pre_header
    _
  $region3: #{ca_wx_pallas.3} parent=0 // loop_header
    %s9 = sphi 0, %s13
    %p10 = scmp.ge.s32.totalorder %s9, 4
    %s16 = sphi 0, %s28
    %s17 = sphi 0, %s24
    %s18 = sphi 0, %s16
    %s19 = sphi 0, %s17
    %s20 = sphi 0, %s18
    %s21 = sphi 0, %s19
    %s33 = sphi 0, %s35
    %s36 = sphi 0, %s33
    %s37 = sphi 0, %s36
    %s53 = sphi 0, %s37
    %s61 = sphi 0, %s63
    %s64 = sphi 0, %s61
    %s65 = sphi 0, %s64
    %s81 = sphi 0, %s65
    %s89 = sphi 0, %s91
    %s92 = sphi 0, %s89
    %s93 = sphi 0, %s92
    %s109 = sphi 0, %s93
  $region4: #{ca_wx_pallas.3} parent=0 // loop_header_branch
    %12 = sbr.rel (%p10) target = $region8
  $region5: #{ca_wx_pallas.3} parent=0 // loop_body
    %s14 = ssub.s32 %s9, 1
    %s15 = ssub.s32 %s9, 2
    %s22 = sadd.s32 1, %s17
    %p23 = scmp.ge.s32.totalorder %s22, 1
    %s24 = scalar_select %p23, 0, %s22
    %s25 = sadd.s32 1, %s16
    %s26 = scalar_select %p23, %s25, %s16
    %p27 = scmp.ge.s32.totalorder %s26, 2
    %s28 = scalar_select %p27, 0, %s26
    %s29 = ssub.s32 %s16, %s28
    %s30 = ssub.s32 %s17, %s24
    %s31 = sor.u32 %s29, %s30
    %p32 = scmp.eq.s32.totalorder %s31, 0
    %s34 = sadd.s32 %s33, 1
    %s35 = scalar_select %p32, %s33, %s34
    %p38 = pneg %p32
    %p39 = scmp.eq.s32.totalorder %s9, 1
    %p40 = por %p38, %p39
    %p41 = scmp.ne.s32.totalorder %s33, %s36
    %p42 = scmp.eq.s32.totalorder %s9, 0
    %p43 = por %p41, %p42
    %p44 = scmp.ne.s32.totalorder %s33, %s36
    %p45 = scmp.eq.s32.totalorder %s14, 1
    %p46 = por %p44, %p45
    %p47 = scmp.ne.s32.totalorder %s36, %s37
    %p48 = scmp.eq.s32.totalorder %s14, 0
    %p49 = por %p47, %p48
    %p50 = scmp.ne.s32.totalorder %s36, %s37
    %p51 = scmp.eq.s32.totalorder %s15, 1
    %p52 = por %p50, %p51
    %p54 = scmp.ne.s32.totalorder %s37, %s53
    %p55 = scmp.eq.s32.totalorder %s15, 0
    %p56 = por %p54, %p55
    %s57 = ssub.s32 %s16, %s28
    %s58 = ssub.s32 %s17, %s24
    %s59 = sor.u32 %s57, %s58
    %p60 = scmp.eq.s32.totalorder %s59, 0
    %s62 = sadd.s32 %s61, 1
    %s63 = scalar_select %p60, %s61, %s62
    %p66 = pneg %p60
    %p67 = scmp.eq.s32.totalorder %s9, 1
    %p68 = por %p66, %p67
    %p69 = scmp.ne.s32.totalorder %s61, %s64
    %p70 = scmp.eq.s32.totalorder %s9, 0
    %p71 = por %p69, %p70
    %p72 = scmp.ne.s32.totalorder %s61, %s64
    %p73 = scmp.eq.s32.totalorder %s14, 1
    %p74 = por %p72, %p73
    %p75 = scmp.ne.s32.totalorder %s64, %s65
    %p76 = scmp.eq.s32.totalorder %s14, 0
    %p77 = por %p75, %p76
    %p78 = scmp.ne.s32.totalorder %s64, %s65
    %p79 = scmp.eq.s32.totalorder %s15, 1
    %p80 = por %p78, %p79
    %p82 = scmp.ne.s32.totalorder %s65, %s81
    %p83 = scmp.eq.s32.totalorder %s15, 0
    %p84 = por %p82, %p83
    %s85 = ssub.s32 %s16, %s28
    %s86 = ssub.s32 %s17, %s24
    %s87 = sor.u32 %s85, %s86
    %p88 = scmp.eq.s32.totalorder %s87, 0
    %s90 = sadd.s32 %s89, 1
    %s91 = scalar_select %p88, %s89, %s90
    %p94 = pneg %p88
    %p95 = scmp.eq.s32.totalorder %s9, 1
    %p96 = por %p94, %p95
    %p97 = scmp.ne.s32.totalorder %s89, %s92
    %p98 = scmp.eq.s32.totalorder %s9, 0
    %p99 = por %p97, %p98
    %p100 = scmp.ne.s32.totalorder %s89, %s92
    %p101 = scmp.eq.s32.totalorder %s14, 1
    %p102 = por %p100, %p101
    %p103 = scmp.ne.s32.totalorder %s92, %s93
    %p104 = scmp.eq.s32.totalorder %s14, 0
    %p105 = por %p103, %p104
    %p106 = scmp.ne.s32.totalorder %s92, %s93
    %p107 = scmp.eq.s32.totalorder %s15, 1
    %p108 = por %p106, %p107
    %p110 = scmp.ne.s32.totalorder %s93, %s109
    %p111 = scmp.eq.s32.totalorder %s15, 0
    %p112 = por %p110, %p111
    %p113 = scmp.le.s32.totalorder 1, %s9
    %p114 = scmp.lt.s32.totalorder %s9, 3
    %p115 = pnand %p113, %p114
    %p116 = pneg %p115
    // Predicated region
    $region9: #{ca_wx_pallas.3} parent=5 // pred_check
      _
    $region10: #{ca_wx_pallas.3} parent=5 // pred_check_branch
      %118 = sbr.rel (%p115) target = $region12
    $region11: #{ca_wx_pallas.3} parent=5 // pred_region
      %s119 = ssub.s32 %s9, 1
    $region12: #{ca_wx_pallas.3} parent=5 // pred_fallthru
      _
    %p120 = scmp.lt.s32.totalorder %s9, 2
    // Predicated region
    $region13: #{ca_wx_pallas.3} parent=5 // pred_check
      %p121 = pneg %p120
    $region14: #{ca_wx_pallas.3} parent=5 // pred_check_branch
      %123 = sbr.rel (%p121) target = $region16
    $region15: #{ca_wx_pallas.3} parent=5 // pred_region
      // Predicated region
      $region17: #{ca_wx_pallas.3} parent=15 // pred_check
        %p124 = pneg %p43
      $region18: #{ca_wx_pallas.3} parent=15 // pred_check_branch
        %126 = sbr.rel (%p124) target = $region20
      $region19: #{ca_wx_pallas.3} parent=15 // pred_region
        %s127 = smul.u32 16, %s17
        %p128 = scmp.lt.s32.totalorder %s16, 1
        %s129 = scalar_select %p128, %s16, 1
        %p130 = scmp.lt.s32.totalorder %s127, 15
        %s131 = scalar_select %p130, %s127, 15
        %s132 = smul.addr %s131, 2
        %s133 = smul.addr %s129, 32
        %s134 = sadd.s32 %s132, %s133
        %s135 = smul.addr %s134, 8
        %s136 = scalar_lea.vmem %s0, %s135
        %s137 = smul.u32 16, %s17
      $region20: #{ca_wx_pallas.3} parent=15 // pred_fallthru
        _
    $region16: #{ca_wx_pallas.3} parent=5 // pred_fallthru
      _
    %p138 = scmp.le.s32.totalorder 1, %s9
    %p139 = scmp.lt.s32.totalorder %s9, 3
    %p140 = pnand %p138, %p139
    %p141 = pneg %p140
    // Predicated region
    $region21: #{ca_wx_pallas.3} parent=5 // pred_check
      _
    $region22: #{ca_wx_pallas.3} parent=5 // pred_check_branch
      %143 = sbr.rel (%p140) target = $region24
    $region23: #{ca_wx_pallas.3} parent=5 // pred_region
      %s144 = ssub.s32 %s9, 1
      %s145 = smul.u32 16, %s19
      %p146 = scmp.lt.s32.totalorder %s18, 1
      %s147 = scalar_select %p146, %s18, 1
      %p148 = scmp.lt.s32.totalorder %s145, 15
      %s149 = scalar_select %p148, %s145, 15
      %s150 = smul.addr %s149, 2
      %s151 = smul.addr %s147, 32
      %s152 = sadd.s32 %s150, %s151
      %s153 = smul.addr %s152, 8
      %s154 = scalar_lea.vmem %s0, %s153
      %p155 = pneg %p49
      %p156 = pneg %p46
      %p157 = pneg %p77
      %p158 = pneg %p74
      %s159 = smul.u32 16, %s19
      %p160 = scmp.lt.s32.totalorder %s18, 1
      %s161 = scalar_select %p160, %s18, 1
      %p162 = scmp.lt.s32.totalorder %s159, 15
      %s163 = scalar_select %p162, %s159, 15
      %s164 = smul.addr %s161, 16
      %s165 = sadd.s32 %s163, %s164
      %s166 = smul.addr %s165, 8
      %s167 = scalar_lea.vmem %s1, %s166
      %p168 = pneg %p105
      %p169 = pneg %p102
      %s170 = smul.u32 16, %s19
      %p171 = scmp.lt.s32.totalorder %s18, 1
      %s172 = scalar_select %p171, %s18, 1
      %p173 = scmp.lt.s32.totalorder %s170, 15
      %s174 = scalar_select %p173, %s170, 15
      %s175 = smul.addr %s172, 16
      %s176 = sadd.s32 %s174, %s175
      %s177 = smul.addr %s176, 8
      %s178 = scalar_lea.vmem %s2, %s177
      %s179 = smul.u32 16, %s19
      %p180 = scmp.lt.s32.totalorder %s18, 1
      %s181 = scalar_select %p180, %s18, 1
      %p182 = scmp.lt.s32.totalorder %s179, 15
      %s183 = scalar_select %p182, %s179, 15
      %s184 = smul.addr %s183, 2
      %s185 = smul.addr %s181, 32
      %s186 = sadd.s32 %s184, %s185
      %s187 = smul.addr %s186, 8
      %s188 = scalar_lea.vmem %s0, %s187
      %s189 = smul.u32 16, %s19
      %s190 = smul.u32 16, %s19
      %p191 = scmp.lt.s32.totalorder %s18, 1
      %s192 = scalar_select %p191, %s18, 1
      %p193 = scmp.lt.s32.totalorder %s190, 15
      %s194 = scalar_select %p193, %s190, 15
      %s195 = smul.addr %s192, 16
      %s196 = sadd.s32 %s194, %s195
      %s197 = smul.addr %s196, 8
      %s198 = scalar_lea.vmem %s1, %s197
      %s199 = smul.u32 16, %s19
      %s200 = smul.u32 16, %s19
      %p201 = scmp.lt.s32.totalorder %s18, 1
      %s202 = scalar_select %p201, %s18, 1
      %p203 = scmp.lt.s32.totalorder %s200, 15
      %s204 = scalar_select %p203, %s200, 15
      %s205 = smul.addr %s202, 16
      %s206 = sadd.s32 %s204, %s205
      %s207 = smul.addr %s206, 8
      %s208 = scalar_lea.vmem %s2, %s207
      %s209 = smul.u32 16, %s19
      %v210 = vld [vmem:[%s188] sm:$0xff]
      %v211 = vld [vmem:[%s188 + $0x8] sm:$0xff]
      %v212 = vld [vmem:[%s188 + $0x10] sm:$0xff]
      %v213 = vld [vmem:[%s188 + $0x18] sm:$0xff]
      %v214 = vld [vmem:[%s188 + $0x20] sm:$0xff]
      %v215 = vld [vmem:[%s188 + $0x28] sm:$0xff]
      %v216 = vld [vmem:[%s188 + $0x30] sm:$0xff]
      %v217 = vld [vmem:[%s188 + $0x38] sm:$0xff]
      %v218 = vld [vmem:[%s188 + $0x40] sm:$0xff]
      %v219 = vld [vmem:[%s188 + $0x48] sm:$0xff]
      %v220 = vld [vmem:[%s188 + $0x50] sm:$0xff]
      %v221 = vld [vmem:[%s188 + $0x58] sm:$0xff]
      %v222 = vld [vmem:[%s188 + $0x60] sm:$0xff]
      %v223 = vld [vmem:[%s188 + $0x68] sm:$0xff]
      %v224 = vld [vmem:[%s188 + $0x70] sm:$0xff]
      %v225 = vld [vmem:[%s188 + $0x78] sm:$0xff]
      %v226 = vld [vmem:[%s188 + $0x80] sm:$0xff]
      %v227 = vld [vmem:[%s188 + $0x88] sm:$0xff]
      %v228 = vld [vmem:[%s188 + $0x90] sm:$0xff]
      %v229 = vld [vmem:[%s188 + $0x98] sm:$0xff]
      %v230 = vld [vmem:[%s188 + $0xa0] sm:$0xff]
      %v231 = vld [vmem:[%s188 + $0xa8] sm:$0xff]
      %v232 = vld [vmem:[%s188 + $0xb0] sm:$0xff]
      %v233 = vld [vmem:[%s188 + $0xb8] sm:$0xff]
      %v234 = vld [vmem:[%s188 + $0xc0] sm:$0xff]
      %v235 = vld [vmem:[%s188 + $0xc8] sm:$0xff]
      %v236 = vld [vmem:[%s188 + $0xd0] sm:$0xff]
      %v237 = vld [vmem:[%s188 + $0xd8] sm:$0xff]
      %v238 = vld [vmem:[%s188 + $0xe0] sm:$0xff]
      %v239 = vld [vmem:[%s188 + $0xe8] sm:$0xff]
      %v240 = vld [vmem:[%s188 + $0xf0] sm:$0xff]
      %v241 = vld [vmem:[%s188 + $0xf8] sm:$0xff]
      %v242 = vadd.f32 %v210, %v211
      %243 = vadd.xlane.f32.xlu0 %v242
      %v244 = vpop.xlane.xlu0 %243
      %v245 = vadd.f32 %v212, %v213
      %246 = vadd.xlane.f32.xlu0 %v245
      %v247 = vpop.xlane.xlu0 %246
      %v248 = vadd.f32 %v214, %v215
      %249 = vadd.xlane.f32.xlu0 %v248
      %v250 = vpop.xlane.xlu0 %249
      %v251 = vadd.f32 %v216, %v217
      %252 = vadd.xlane.f32.xlu0 %v251
      %v253 = vpop.xlane.xlu0 %252
      %v254 = vadd.f32 %v218, %v219
      %255 = vadd.xlane.f32.xlu0 %v254
      %v256 = vpop.xlane.xlu0 %255
      %v257 = vadd.f32 %v220, %v221
      %258 = vadd.xlane.f32.xlu0 %v257
      %v259 = vpop.xlane.xlu0 %258
      %v260 = vadd.f32 %v222, %v223
      %261 = vadd.xlane.f32.xlu0 %v260
      %v262 = vpop.xlane.xlu0 %261
      %v263 = vadd.f32 %v224, %v225
      %264 = vadd.xlane.f32.xlu0 %v263
      %v265 = vpop.xlane.xlu0 %264
      %v266 = vadd.f32 %v226, %v227
      %267 = vadd.xlane.f32.xlu0 %v266
      %v268 = vpop.xlane.xlu0 %267
      %v269 = vadd.f32 %v228, %v229
      %270 = vadd.xlane.f32.xlu0 %v269
      %v271 = vpop.xlane.xlu0 %270
      %v272 = vadd.f32 %v230, %v231
      %273 = vadd.xlane.f32.xlu0 %v272
      %v274 = vpop.xlane.xlu0 %273
      %v275 = vadd.f32 %v232, %v233
      %276 = vadd.xlane.f32.xlu0 %v275
      %v277 = vpop.xlane.xlu0 %276
      %v278 = vadd.f32 %v234, %v235
      %279 = vadd.xlane.f32.xlu0 %v278
      %v280 = vpop.xlane.xlu0 %279
      %v281 = vadd.f32 %v236, %v237
      %282 = vadd.xlane.f32.xlu0 %v281
      %v283 = vpop.xlane.xlu0 %282
      %v284 = vadd.f32 %v238, %v239
      %285 = vadd.xlane.f32.xlu0 %v284
      %v286 = vpop.xlane.xlu0 %285
      %v287 = vadd.f32 %v240, %v241
      %288 = vadd.xlane.f32.xlu0 %v287
      %v289 = vpop.xlane.xlu0 %288
      %v290 = vmul.f32 %v244, 0.00390625
      %v291 = vmul.f32 %v247, 0.00390625
      %v292 = vmul.f32 %v250, 0.00390625
      %v293 = vmul.f32 %v253, 0.00390625
      %v294 = vmul.f32 %v256, 0.00390625
      %v295 = vmul.f32 %v259, 0.00390625
      %v296 = vmul.f32 %v262, 0.00390625
      %v297 = vmul.f32 %v265, 0.00390625
      %v298 = vmul.f32 %v268, 0.00390625
      %v299 = vmul.f32 %v271, 0.00390625
      %v300 = vmul.f32 %v274, 0.00390625
      %v301 = vmul.f32 %v277, 0.00390625
      %v302 = vmul.f32 %v280, 0.00390625
      %v303 = vmul.f32 %v283, 0.00390625
      %v304 = vmul.f32 %v286, 0.00390625
      %v305 = vmul.f32 %v289, 0.00390625
      %vm306 = vcmask 7168
      %307 = vst.msk [vmem:[%s198] sm:$0xff] %vm306, %v290
      %308 = vst.msk [vmem:[%s198 + $0x8] sm:$0xff] %vm306, %v291
      %309 = vst.msk [vmem:[%s198 + $0x10] sm:$0xff] %vm306, %v292
      %310 = vst.msk [vmem:[%s198 + $0x18] sm:$0xff] %vm306, %v293
      %311 = vst.msk [vmem:[%s198 + $0x20] sm:$0xff] %vm306, %v294
      %312 = vst.msk [vmem:[%s198 + $0x28] sm:$0xff] %vm306, %v295
      %313 = vst.msk [vmem:[%s198 + $0x30] sm:$0xff] %vm306, %v296
      %314 = vst.msk [vmem:[%s198 + $0x38] sm:$0xff] %vm306, %v297
      %315 = vst.msk [vmem:[%s198 + $0x40] sm:$0xff] %vm306, %v298
      %316 = vst.msk [vmem:[%s198 + $0x48] sm:$0xff] %vm306, %v299
      %317 = vst.msk [vmem:[%s198 + $0x50] sm:$0xff] %vm306, %v300
      %318 = vst.msk [vmem:[%s198 + $0x58] sm:$0xff] %vm306, %v301
      %319 = vst.msk [vmem:[%s198 + $0x60] sm:$0xff] %vm306, %v302
      %320 = vst.msk [vmem:[%s198 + $0x68] sm:$0xff] %vm306, %v303
      %321 = vst.msk [vmem:[%s198 + $0x70] sm:$0xff] %vm306, %v304
      %322 = vst.msk [vmem:[%s198 + $0x78] sm:$0xff] %vm306, %v305
      %v323 = vmax.f32 %v210, %v211
      %324 = vmax.xlane.f32.xlu0 %v323
      %v325 = vpop.xlane.xlu0 %324
      %v326 = vmax.f32 %v212, %v213
      %327 = vmax.xlane.f32.xlu0 %v326
      %v328 = vpop.xlane.xlu0 %327
      %v329 = vmax.f32 %v214, %v215
      %330 = vmax.xlane.f32.xlu0 %v329
      %v331 = vpop.xlane.xlu0 %330
      %v332 = vmax.f32 %v216, %v217
      %333 = vmax.xlane.f32.xlu0 %v332
      %v334 = vpop.xlane.xlu0 %333
      %v335 = vmax.f32 %v218, %v219
      %336 = vmax.xlane.f32.xlu0 %v335
      %v337 = vpop.xlane.xlu0 %336
      %v338 = vmax.f32 %v220, %v221
      %339 = vmax.xlane.f32.xlu0 %v338
      %v340 = vpop.xlane.xlu0 %339
      %v341 = vmax.f32 %v222, %v223
      %342 = vmax.xlane.f32.xlu0 %v341
      %v343 = vpop.xlane.xlu0 %342
      %v344 = vmax.f32 %v224, %v225
      %345 = vmax.xlane.f32.xlu0 %v344
      %v346 = vpop.xlane.xlu0 %345
      %v347 = vmax.f32 %v226, %v227
      %348 = vmax.xlane.f32.xlu0 %v347
      %v349 = vpop.xlane.xlu0 %348
      %v350 = vmax.f32 %v228, %v229
      %351 = vmax.xlane.f32.xlu0 %v350
      %v352 = vpop.xlane.xlu0 %351
      %v353 = vmax.f32 %v230, %v231
      %354 = vmax.xlane.f32.xlu0 %v353
      %v355 = vpop.xlane.xlu0 %354
      %v356 = vmax.f32 %v232, %v233
      %357 = vmax.xlane.f32.xlu0 %v356
      %v358 = vpop.xlane.xlu0 %357
      %v359 = vmax.f32 %v234, %v235
      %360 = vmax.xlane.f32.xlu0 %v359
      %v361 = vpop.xlane.xlu0 %360
      %v362 = vmax.f32 %v236, %v237
      %363 = vmax.xlane.f32.xlu0 %v362
      %v364 = vpop.xlane.xlu0 %363
      %v365 = vmax.f32 %v238, %v239
      %366 = vmax.xlane.f32.xlu0 %v365
      %v367 = vpop.xlane.xlu0 %366
      %v368 = vmax.f32 %v240, %v241
      %369 = vmax.xlane.f32.xlu0 %v368
      %v370 = vpop.xlane.xlu0 %369
      %371 = vst.msk [vmem:[%s208] sm:$0xff] %vm306, %v325
      %372 = vst.msk [vmem:[%s208 + $0x8] sm:$0xff] %vm306, %v328
      %373 = vst.msk [vmem:[%s208 + $0x10] sm:$0xff] %vm306, %v331
      %374 = vst.msk [vmem:[%s208 + $0x18] sm:$0xff] %vm306, %v334
      %375 = vst.msk [vmem:[%s208 + $0x20] sm:$0xff] %vm306, %v337
      %376 = vst.msk [vmem:[%s208 + $0x28] sm:$0xff] %vm306, %v340
      %377 = vst.msk [vmem:[%s208 + $0x30] sm:$0xff] %vm306, %v343
      %378 = vst.msk [vmem:[%s208 + $0x38] sm:$0xff] %vm306, %v346
      %379 = vst.msk [vmem:[%s208 + $0x40] sm:$0xff] %vm306, %v349
      %380 = vst.msk [vmem:[%s208 + $0x48] sm:$0xff] %vm306, %v352
      %381 = vst.msk [vmem:[%s208 + $0x50] sm:$0xff] %vm306, %v355
      %382 = vst.msk [vmem:[%s208 + $0x58] sm:$0xff] %vm306, %v358
      %383 = vst.msk [vmem:[%s208 + $0x60] sm:$0xff] %vm306, %v361
      %384 = vst.msk [vmem:[%s208 + $0x68] sm:$0xff] %vm306, %v364
      %385 = vst.msk [vmem:[%s208 + $0x70] sm:$0xff] %vm306, %v367
      %386 = vst.msk [vmem:[%s208 + $0x78] sm:$0xff] %vm306, %v370
      %s387 = smul.u32 16, %s19
      %p388 = scmp.lt.s32.totalorder %s18, 1
      %s389 = scalar_select %p388, %s18, 1
      %p390 = scmp.lt.s32.totalorder %s387, 15
      %s391 = scalar_select %p390, %s387, 15
      %s392 = smul.addr %s389, 16
      %s393 = sadd.s32 %s391, %s392
      %s394 = smul.addr %s393, 8
      %s395 = scalar_lea.vmem %s1, %s394
      %s396 = smul.u32 16, %s19
      %p397 = scmp.lt.s32.totalorder %s18, 1
      %s398 = scalar_select %p397, %s18, 1
      %p399 = scmp.lt.s32.totalorder %s396, 15
      %s400 = scalar_select %p399, %s396, 15
      %s401 = smul.addr %s398, 16
      %s402 = sadd.s32 %s400, %s401
      %s403 = smul.addr %s402, 8
      %s404 = scalar_lea.vmem %s2, %s403
      // Predicated region
      $region25: #{ca_wx_pallas.3} parent=23 // pred_check
        %p405 = pneg %p74
      $region26: #{ca_wx_pallas.3} parent=23 // pred_check_branch
        %407 = sbr.rel (%p405) target = $region28
      $region27: #{ca_wx_pallas.3} parent=23 // pred_region
        %s408 = smul.u32 16, %s19
      $region28: #{ca_wx_pallas.3} parent=23 // pred_fallthru
        _
      // Predicated region
      $region29: #{ca_wx_pallas.3} parent=23 // pred_check
        %p409 = pneg %p102
      $region30: #{ca_wx_pallas.3} parent=23 // pred_check_branch
        %411 = sbr.rel (%p409) target = $region32
      $region31: #{ca_wx_pallas.3} parent=23 // pred_region
        %s412 = smul.u32 16, %s19
      $region32: #{ca_wx_pallas.3} parent=23 // pred_fallthru
        _
    $region24: #{ca_wx_pallas.3} parent=5 // pred_fallthru
      _
    %p413 = scmp.le.s32.totalorder 2, %s9
    // Predicated region
    $region33: #{ca_wx_pallas.3} parent=5 // pred_check
      %p414 = pneg %p413
    $region34: #{ca_wx_pallas.3} parent=5 // pred_check_branch
      %416 = sbr.rel (%p414) target = $region36
    $region35: #{ca_wx_pallas.3} parent=5 // pred_region
      %s417 = ssub.s32 %s9, 2
      // Predicated region
      $region37: #{ca_wx_pallas.3} parent=35 // pred_check
        %p418 = pneg %p80
      $region38: #{ca_wx_pallas.3} parent=35 // pred_check_branch
        %420 = sbr.rel (%p418) target = $region40
      $region39: #{ca_wx_pallas.3} parent=35 // pred_region
        %s421 = smul.u32 16, %s21
        %p422 = scmp.lt.s32.totalorder %s20, 1
        %s423 = scalar_select %p422, %s20, 1
        %p424 = scmp.lt.s32.totalorder %s421, 15
        %s425 = scalar_select %p424, %s421, 15
        %s426 = smul.addr %s423, 16
        %s427 = sadd.s32 %s425, %s426
        %s428 = smul.addr %s427, 8
        %s429 = scalar_lea.vmem %s1, %s428
      $region40: #{ca_wx_pallas.3} parent=35 // pred_fallthru
        _
      // Predicated region
      $region41: #{ca_wx_pallas.3} parent=35 // pred_check
        %p430 = pneg %p108
      $region42: #{ca_wx_pallas.3} parent=35 // pred_check_branch
        %432 = sbr.rel (%p430) target = $region44
      $region43: #{ca_wx_pallas.3} parent=35 // pred_region
        %s433 = smul.u32 16, %s21
        %p434 = scmp.lt.s32.totalorder %s20, 1
        %s435 = scalar_select %p434, %s20, 1
        %p436 = scmp.lt.s32.totalorder %s433, 15
        %s437 = scalar_select %p436, %s433, 15
        %s438 = smul.addr %s435, 16
        %s439 = sadd.s32 %s437, %s438
        %s440 = smul.addr %s439, 8
        %s441 = scalar_lea.vmem %s2, %s440
      $region44: #{ca_wx_pallas.3} parent=35 // pred_fallthru
        _
    $region36: #{ca_wx_pallas.3} parent=5 // pred_fallthru
      _
  $region6: #{ca_wx_pallas.3} parent=0 // loop_footer
    %s13 = sadd.s32 1, %s9
  $region7: #{ca_wx_pallas.3} parent=0 // loop_footer_branch
    %8 = sbr.rel target = $region3
  $region8: #{ca_wx_pallas.3} parent=0 // loop_exit
    _

// kernel: ca_wx_pallas.5
$region0: #{ca_wx_pallas.5}
  #allocation0 [shape = 'u32[]', space=smem, size = 0x4, offset = 0x4, fixed_abs, tag = 'smem constant byte address 0x4 - core index']
  #allocation1 [shape = 'u32[144,128]{1,0:T(1,128)}', space=vmem, size = 0x12000, scoped, tag = 'internal scratch']
  %s0 = inlined_call_operand.vmem [shape: f32[2,128,256], index: 0, kind: input, shape index: {}]
  %s1 = inlined_call_operand.vmem [shape: f32[2,128,1], index: 1, kind: input, shape index: {}]
  %s2 = inlined_call_operand.vmem [shape: f32[2,128,256], index: 2, kind: output, shape index: {}]
  %s3 = sld [smem:[#allocation0]]
  $region41: #{ca_wx_pallas.5} parent=0
    _
  %s5 = ssub.s32 1, %s3
  %s6 = scalar_select 0, %s5, %s3
  loop: start=0, step=1, limit=4
  $region2: #{ca_wx_pallas.5} parent=0 // loop_pre_header
    _
  $region3: #{ca_wx_pallas.5} parent=0 // loop_header
    %s8 = sphi 0, %s12
    %p9 = scmp.ge.s32.totalorder %s8, 4
    %s15 = sphi 0, %s27
    %s16 = sphi 0, %s23
    %s17 = sphi 0, %s15
    %s18 = sphi 0, %s16
    %s19 = sphi 0, %s17
    %s20 = sphi 0, %s18
    %s32 = sphi 0, %s34
    %s35 = sphi 0, %s32
    %s36 = sphi 0, %s35
    %s52 = sphi 0, %s36
    %s60 = sphi 0, %s62
    %s63 = sphi 0, %s60
    %s64 = sphi 0, %s63
    %s80 = sphi 0, %s64
    %s88 = sphi 0, %s90
    %s91 = sphi 0, %s88
    %s92 = sphi 0, %s91
    %s108 = sphi 0, %s92
  $region4: #{ca_wx_pallas.5} parent=0 // loop_header_branch
    %11 = sbr.rel (%p9) target = $region8
  $region5: #{ca_wx_pallas.5} parent=0 // loop_body
    %s13 = ssub.s32 %s8, 1
    %s14 = ssub.s32 %s8, 2
    %s21 = sadd.s32 1, %s16
    %p22 = scmp.ge.s32.totalorder %s21, 1
    %s23 = scalar_select %p22, 0, %s21
    %s24 = sadd.s32 1, %s15
    %s25 = scalar_select %p22, %s24, %s15
    %p26 = scmp.ge.s32.totalorder %s25, 2
    %s27 = scalar_select %p26, 0, %s25
    %s28 = ssub.s32 %s15, %s27
    %s29 = ssub.s32 %s16, %s23
    %s30 = sor.u32 %s28, %s29
    %p31 = scmp.eq.s32.totalorder %s30, 0
    %s33 = sadd.s32 %s32, 1
    %s34 = scalar_select %p31, %s32, %s33
    %p37 = pneg %p31
    %p38 = scmp.eq.s32.totalorder %s8, 1
    %p39 = por %p37, %p38
    %p40 = scmp.ne.s32.totalorder %s32, %s35
    %p41 = scmp.eq.s32.totalorder %s8, 0
    %p42 = por %p40, %p41
    %p43 = scmp.ne.s32.totalorder %s32, %s35
    %p44 = scmp.eq.s32.totalorder %s13, 1
    %p45 = por %p43, %p44
    %p46 = scmp.ne.s32.totalorder %s35, %s36
    %p47 = scmp.eq.s32.totalorder %s13, 0
    %p48 = por %p46, %p47
    %p49 = scmp.ne.s32.totalorder %s35, %s36
    %p50 = scmp.eq.s32.totalorder %s14, 1
    %p51 = por %p49, %p50
    %p53 = scmp.ne.s32.totalorder %s36, %s52
    %p54 = scmp.eq.s32.totalorder %s14, 0
    %p55 = por %p53, %p54
    %s56 = ssub.s32 %s15, %s27
    %s57 = ssub.s32 %s16, %s23
    %s58 = sor.u32 %s56, %s57
    %p59 = scmp.eq.s32.totalorder %s58, 0
    %s61 = sadd.s32 %s60, 1
    %s62 = scalar_select %p59, %s60, %s61
    %p65 = pneg %p59
    %p66 = scmp.eq.s32.totalorder %s8, 1
    %p67 = por %p65, %p66
    %p68 = scmp.ne.s32.totalorder %s60, %s63
    %p69 = scmp.eq.s32.totalorder %s8, 0
    %p70 = por %p68, %p69
    %p71 = scmp.ne.s32.totalorder %s60, %s63
    %p72 = scmp.eq.s32.totalorder %s13, 1
    %p73 = por %p71, %p72
    %p74 = scmp.ne.s32.totalorder %s63, %s64
    %p75 = scmp.eq.s32.totalorder %s13, 0
    %p76 = por %p74, %p75
    %p77 = scmp.ne.s32.totalorder %s63, %s64
    %p78 = scmp.eq.s32.totalorder %s14, 1
    %p79 = por %p77, %p78
    %p81 = scmp.ne.s32.totalorder %s64, %s80
    %p82 = scmp.eq.s32.totalorder %s14, 0
    %p83 = por %p81, %p82
    %s84 = ssub.s32 %s15, %s27
    %s85 = ssub.s32 %s16, %s23
    %s86 = sor.u32 %s84, %s85
    %p87 = scmp.eq.s32.totalorder %s86, 0
    %s89 = sadd.s32 %s88, 1
    %s90 = scalar_select %p87, %s88, %s89
    %p93 = pneg %p87
    %p94 = scmp.eq.s32.totalorder %s8, 1
    %p95 = por %p93, %p94
    %p96 = scmp.ne.s32.totalorder %s88, %s91
    %p97 = scmp.eq.s32.totalorder %s8, 0
    %p98 = por %p96, %p97
    %p99 = scmp.ne.s32.totalorder %s88, %s91
    %p100 = scmp.eq.s32.totalorder %s13, 1
    %p101 = por %p99, %p100
    %p102 = scmp.ne.s32.totalorder %s91, %s92
    %p103 = scmp.eq.s32.totalorder %s13, 0
    %p104 = por %p102, %p103
    %p105 = scmp.ne.s32.totalorder %s91, %s92
    %p106 = scmp.eq.s32.totalorder %s14, 1
    %p107 = por %p105, %p106
    %p109 = scmp.ne.s32.totalorder %s92, %s108
    %p110 = scmp.eq.s32.totalorder %s14, 0
    %p111 = por %p109, %p110
    %p112 = scmp.le.s32.totalorder 1, %s8
    %p113 = scmp.lt.s32.totalorder %s8, 3
    %p114 = pnand %p112, %p113
    %p115 = pneg %p114
    // Predicated region
    $region9: #{ca_wx_pallas.5} parent=5 // pred_check
      _
    $region10: #{ca_wx_pallas.5} parent=5 // pred_check_branch
      %117 = sbr.rel (%p114) target = $region12
    $region11: #{ca_wx_pallas.5} parent=5 // pred_region
      %s118 = ssub.s32 %s8, 1
    $region12: #{ca_wx_pallas.5} parent=5 // pred_fallthru
      _
    %p119 = scmp.lt.s32.totalorder %s8, 2
    // Predicated region
    $region13: #{ca_wx_pallas.5} parent=5 // pred_check
      %p120 = pneg %p119
    $region14: #{ca_wx_pallas.5} parent=5 // pred_check_branch
      %122 = sbr.rel (%p120) target = $region16
    $region15: #{ca_wx_pallas.5} parent=5 // pred_region
      // Predicated region
      $region17: #{ca_wx_pallas.5} parent=15 // pred_check
        %p123 = pneg %p42
      $region18: #{ca_wx_pallas.5} parent=15 // pred_check_branch
        %125 = sbr.rel (%p123) target = $region20
      $region19: #{ca_wx_pallas.5} parent=15 // pred_region
        %s126 = smul.u32 16, %s16
        %p127 = scmp.lt.s32.totalorder %s15, 1
        %s128 = scalar_select %p127, %s15, 1
        %p129 = scmp.lt.s32.totalorder %s126, 15
        %s130 = scalar_select %p129, %s126, 15
        %s131 = smul.addr %s130, 2
        %s132 = smul.addr %s128, 32
        %s133 = sadd.s32 %s131, %s132
        %s134 = smul.addr %s133, 8
        %s135 = scalar_lea.vmem %s0, %s134
        %s136 = smul.u32 16, %s16
      $region20: #{ca_wx_pallas.5} parent=15 // pred_fallthru
        _
      // Predicated region
      $region21: #{ca_wx_pallas.5} parent=15 // pred_check
        %p137 = pneg %p70
      $region22: #{ca_wx_pallas.5} parent=15 // pred_check_branch
        %139 = sbr.rel (%p137) target = $region24
      $region23: #{ca_wx_pallas.5} parent=15 // pred_region
        %s140 = smul.u32 16, %s16
        %p141 = scmp.lt.s32.totalorder %s15, 1
        %s142 = scalar_select %p141, %s15, 1
        %p143 = scmp.lt.s32.totalorder %s140, 15
        %s144 = scalar_select %p143, %s140, 15
        %s145 = smul.addr %s142, 16
        %s146 = sadd.s32 %s144, %s145
        %s147 = smul.addr %s146, 8
        %s148 = scalar_lea.vmem %s1, %s147
        %s149 = smul.u32 16, %s16
      $region24: #{ca_wx_pallas.5} parent=15 // pred_fallthru
        _
    $region16: #{ca_wx_pallas.5} parent=5 // pred_fallthru
      _
    %p150 = scmp.le.s32.totalorder 1, %s8
    %p151 = scmp.lt.s32.totalorder %s8, 3
    %p152 = pnand %p150, %p151
    %p153 = pneg %p152
    // Predicated region
    $region25: #{ca_wx_pallas.5} parent=5 // pred_check
      _
    $region26: #{ca_wx_pallas.5} parent=5 // pred_check_branch
      %155 = sbr.rel (%p152) target = $region28
    $region27: #{ca_wx_pallas.5} parent=5 // pred_region
      %s156 = ssub.s32 %s8, 1
      %s157 = smul.u32 16, %s18
      %p158 = scmp.lt.s32.totalorder %s17, 1
      %s159 = scalar_select %p158, %s17, 1
      %p160 = scmp.lt.s32.totalorder %s157, 15
      %s161 = scalar_select %p160, %s157, 15
      %s162 = smul.addr %s161, 2
      %s163 = smul.addr %s159, 32
      %s164 = sadd.s32 %s162, %s163
      %s165 = smul.addr %s164, 8
      %s166 = scalar_lea.vmem %s0, %s165
      %p167 = pneg %p48
      %p168 = pneg %p45
      %s169 = smul.u32 16, %s18
      %p170 = scmp.lt.s32.totalorder %s17, 1
      %s171 = scalar_select %p170, %s17, 1
      %p172 = scmp.lt.s32.totalorder %s169, 15
      %s173 = scalar_select %p172, %s169, 15
      %s174 = smul.addr %s171, 16
      %s175 = sadd.s32 %s173, %s174
      %s176 = smul.addr %s175, 8
      %s177 = scalar_lea.vmem %s1, %s176
      %p178 = pneg %p76
      %p179 = pneg %p73
      %p180 = pneg %p104
      %p181 = pneg %p101
      %s182 = smul.u32 16, %s18
      %p183 = scmp.lt.s32.totalorder %s17, 1
      %s184 = scalar_select %p183, %s17, 1
      %p185 = scmp.lt.s32.totalorder %s182, 15
      %s186 = scalar_select %p185, %s182, 15
      %s187 = smul.addr %s186, 2
      %s188 = smul.addr %s184, 32
      %s189 = sadd.s32 %s187, %s188
      %s190 = smul.addr %s189, 8
      %s191 = scalar_lea.vmem %s2, %s190
      %s192 = smul.u32 16, %s18
      %p193 = scmp.lt.s32.totalorder %s17, 1
      %s194 = scalar_select %p193, %s17, 1
      %p195 = scmp.lt.s32.totalorder %s192, 15
      %s196 = scalar_select %p195, %s192, 15
      %s197 = smul.addr %s196, 2
      %s198 = smul.addr %s194, 32
      %s199 = sadd.s32 %s197, %s198
      %s200 = smul.addr %s199, 8
      %s201 = scalar_lea.vmem %s0, %s200
      %s202 = smul.u32 16, %s18
      %s203 = smul.u32 16, %s18
      %p204 = scmp.lt.s32.totalorder %s17, 1
      %s205 = scalar_select %p204, %s17, 1
      %p206 = scmp.lt.s32.totalorder %s203, 15
      %s207 = scalar_select %p206, %s203, 15
      %s208 = smul.addr %s205, 16
      %s209 = sadd.s32 %s207, %s208
      %s210 = smul.addr %s209, 8
      %s211 = scalar_lea.vmem %s1, %s210
      %s212 = smul.u32 16, %s18
      %s213 = smul.u32 16, %s18
      %p214 = scmp.lt.s32.totalorder %s17, 1
      %s215 = scalar_select %p214, %s17, 1
      %p216 = scmp.lt.s32.totalorder %s213, 15
      %s217 = scalar_select %p216, %s213, 15
      %s218 = smul.addr %s217, 2
      %s219 = smul.addr %s215, 32
      %s220 = sadd.s32 %s218, %s219
      %s221 = smul.addr %s220, 8
      %s222 = scalar_lea.vmem %s2, %s221
      %s223 = smul.u32 16, %s18
      %v224 = vld [vmem:[%s201] sm:$0xff]
      %v225 = vld [vmem:[%s201 + $0x8] sm:$0xff]
      %v226 = vld [vmem:[%s201 + $0x10] sm:$0xff]
      %v227 = vld [vmem:[%s201 + $0x18] sm:$0xff]
      %v228 = vld [vmem:[%s201 + $0x20] sm:$0xff]
      %v229 = vld [vmem:[%s201 + $0x28] sm:$0xff]
      %v230 = vld [vmem:[%s201 + $0x30] sm:$0xff]
      %v231 = vld [vmem:[%s201 + $0x38] sm:$0xff]
      %v232 = vld [vmem:[%s201 + $0x40] sm:$0xff]
      %v233 = vld [vmem:[%s201 + $0x48] sm:$0xff]
      %v234 = vld [vmem:[%s201 + $0x50] sm:$0xff]
      %v235 = vld [vmem:[%s201 + $0x58] sm:$0xff]
      %v236 = vld [vmem:[%s201 + $0x60] sm:$0xff]
      %v237 = vld [vmem:[%s201 + $0x68] sm:$0xff]
      %v238 = vld [vmem:[%s201 + $0x70] sm:$0xff]
      %v239 = vld [vmem:[%s201 + $0x78] sm:$0xff]
      %v240 = vld [vmem:[%s201 + $0x80] sm:$0xff]
      %v241 = vld [vmem:[%s201 + $0x88] sm:$0xff]
      %v242 = vld [vmem:[%s201 + $0x90] sm:$0xff]
      %v243 = vld [vmem:[%s201 + $0x98] sm:$0xff]
      %v244 = vld [vmem:[%s201 + $0xa0] sm:$0xff]
      %v245 = vld [vmem:[%s201 + $0xa8] sm:$0xff]
      %v246 = vld [vmem:[%s201 + $0xb0] sm:$0xff]
      %v247 = vld [vmem:[%s201 + $0xb8] sm:$0xff]
      %v248 = vld [vmem:[%s201 + $0xc0] sm:$0xff]
      %v249 = vld [vmem:[%s201 + $0xc8] sm:$0xff]
      %v250 = vld [vmem:[%s201 + $0xd0] sm:$0xff]
      %v251 = vld [vmem:[%s201 + $0xd8] sm:$0xff]
      %v252 = vld [vmem:[%s201 + $0xe0] sm:$0xff]
      %v253 = vld [vmem:[%s201 + $0xe8] sm:$0xff]
      %v254 = vld [vmem:[%s201 + $0xf0] sm:$0xff]
      %v255 = vld [vmem:[%s201 + $0xf8] sm:$0xff]
      %v256 = vld [vmem:[%s211] sm:$0xff]
      %v257 = vld [vmem:[%s211 + $0x8] sm:$0xff]
      %v258 = vld [vmem:[%s211 + $0x10] sm:$0xff]
      %v259 = vld [vmem:[%s211 + $0x18] sm:$0xff]
      %v260 = vld [vmem:[%s211 + $0x20] sm:$0xff]
      %v261 = vld [vmem:[%s211 + $0x28] sm:$0xff]
      %v262 = vld [vmem:[%s211 + $0x30] sm:$0xff]
      %v263 = vld [vmem:[%s211 + $0x38] sm:$0xff]
      %v264 = vld [vmem:[%s211 + $0x40] sm:$0xff]
      %v265 = vld [vmem:[%s211 + $0x48] sm:$0xff]
      %v266 = vld [vmem:[%s211 + $0x50] sm:$0xff]
      %v267 = vld [vmem:[%s211 + $0x58] sm:$0xff]
      %v268 = vld [vmem:[%s211 + $0x60] sm:$0xff]
      %v269 = vld [vmem:[%s211 + $0x68] sm:$0xff]
      %v270 = vld [vmem:[%s211 + $0x70] sm:$0xff]
      %v271 = vld [vmem:[%s211 + $0x78] sm:$0xff]
      %273 = vset.pattern.permute.xlu0 0
      %274 = vperm.xlu0 %273, %v256
      %v275 = vpop.permute.xlu0 %274
      %278 = vset.pattern.permute.xlu0 0
      %279 = vperm.xlu0 %278, %v257
      %v280 = vpop.permute.xlu0 %279
      %283 = vset.pattern.permute.xlu0 0
      %284 = vperm.xlu0 %283, %v258
      %v285 = vpop.permute.xlu0 %284
      %288 = vset.pattern.permute.xlu0 0
      %289 = vperm.xlu0 %288, %v259
      %v290 = vpop.permute.xlu0 %289
      %293 = vset.pattern.permute.xlu0 0
      %294 = vperm.xlu0 %293, %v260
      %v295 = vpop.permute.xlu0 %294
      %298 = vset.pattern.permute.xlu0 0
      %299 = vperm.xlu0 %298, %v261
      %v300 = vpop.permute.xlu0 %299
      %303 = vset.pattern.permute.xlu0 0
      %304 = vperm.xlu0 %303, %v262
      %v305 = vpop.permute.xlu0 %304
      %308 = vset.pattern.permute.xlu0 0
      %309 = vperm.xlu0 %308, %v263
      %v310 = vpop.permute.xlu0 %309
      %313 = vset.pattern.permute.xlu0 0
      %314 = vperm.xlu0 %313, %v264
      %v315 = vpop.permute.xlu0 %314
      %318 = vset.pattern.permute.xlu0 0
      %319 = vperm.xlu0 %318, %v265
      %v320 = vpop.permute.xlu0 %319
      %323 = vset.pattern.permute.xlu0 0
      %324 = vperm.xlu0 %323, %v266
      %v325 = vpop.permute.xlu0 %324
      %328 = vset.pattern.permute.xlu0 0
      %329 = vperm.xlu0 %328, %v267
      %v330 = vpop.permute.xlu0 %329
      %333 = vset.pattern.permute.xlu0 0
      %334 = vperm.xlu0 %333, %v268
      %v335 = vpop.permute.xlu0 %334
      %338 = vset.pattern.permute.xlu0 0
      %339 = vperm.xlu0 %338, %v269
      %v340 = vpop.permute.xlu0 %339
      %343 = vset.pattern.permute.xlu0 0
      %344 = vperm.xlu0 %343, %v270
      %v345 = vpop.permute.xlu0 %344
      %348 = vset.pattern.permute.xlu0 0
      %349 = vperm.xlu0 %348, %v271
      %v350 = vpop.permute.xlu0 %349
      %v352 = vmul.f32 %v224, %v275
      %v353 = vmul.f32 %v225, %v275
      %v354 = vmul.f32 %v226, %v280
      %v355 = vmul.f32 %v227, %v280
      %v356 = vmul.f32 %v228, %v285
      %v357 = vmul.f32 %v229, %v285
      %v358 = vmul.f32 %v230, %v290
      %v359 = vmul.f32 %v231, %v290
      %v360 = vmul.f32 %v232, %v295
      %v361 = vmul.f32 %v233, %v295
      %v362 = vmul.f32 %v234, %v300
      %v363 = vmul.f32 %v235, %v300
      %v364 = vmul.f32 %v236, %v305
      %v365 = vmul.f32 %v237, %v305
      %v366 = vmul.f32 %v238, %v310
      %v367 = vmul.f32 %v239, %v310
      %v368 = vmul.f32 %v240, %v315
      %v369 = vmul.f32 %v241, %v315
      %v370 = vmul.f32 %v242, %v320
      %v371 = vmul.f32 %v243, %v320
      %v372 = vmul.f32 %v244, %v325
      %v373 = vmul.f32 %v245, %v325
      %v374 = vmul.f32 %v246, %v330
      %v375 = vmul.f32 %v247, %v330
      %v376 = vmul.f32 %v248, %v335
      %v377 = vmul.f32 %v249, %v335
      %v378 = vmul.f32 %v250, %v340
      %v379 = vmul.f32 %v251, %v340
      %v380 = vmul.f32 %v252, %v345
      %v381 = vmul.f32 %v253, %v345
      %v382 = vmul.f32 %v254, %v350
      %v383 = vmul.f32 %v255, %v350
      %384 = vst [vmem:[%s222] sm:$0xff] %v352
      %385 = vst [vmem:[%s222 + $0x8] sm:$0xff] %v353
      %386 = vst [vmem:[%s222 + $0x10] sm:$0xff] %v354
      %387 = vst [vmem:[%s222 + $0x18] sm:$0xff] %v355
      %388 = vst [vmem:[%s222 + $0x20] sm:$0xff] %v356
      %389 = vst [vmem:[%s222 + $0x28] sm:$0xff] %v357
      %390 = vst [vmem:[%s222 + $0x30] sm:$0xff] %v358
      %391 = vst [vmem:[%s222 + $0x38] sm:$0xff] %v359
      %392 = vst [vmem:[%s222 + $0x40] sm:$0xff] %v360
      %393 = vst [vmem:[%s222 + $0x48] sm:$0xff] %v361
      %394 = vst [vmem:[%s222 + $0x50] sm:$0xff] %v362
      %395 = vst [vmem:[%s222 + $0x58] sm:$0xff] %v363
      %396 = vst [vmem:[%s222 + $0x60] sm:$0xff] %v364
      %397 = vst [vmem:[%s222 + $0x68] sm:$0xff] %v365
      %398 = vst [vmem:[%s222 + $0x70] sm:$0xff] %v366
      %399 = vst [vmem:[%s222 + $0x78] sm:$0xff] %v367
      %400 = vst [vmem:[%s222 + $0x80] sm:$0xff] %v368
      %401 = vst [vmem:[%s222 + $0x88] sm:$0xff] %v369
      %402 = vst [vmem:[%s222 + $0x90] sm:$0xff] %v370
      %403 = vst [vmem:[%s222 + $0x98] sm:$0xff] %v371
      %404 = vst [vmem:[%s222 + $0xa0] sm:$0xff] %v372
      %405 = vst [vmem:[%s222 + $0xa8] sm:$0xff] %v373
      %406 = vst [vmem:[%s222 + $0xb0] sm:$0xff] %v374
      %407 = vst [vmem:[%s222 + $0xb8] sm:$0xff] %v375
      %408 = vst [vmem:[%s222 + $0xc0] sm:$0xff] %v376
      %409 = vst [vmem:[%s222 + $0xc8] sm:$0xff] %v377
      %410 = vst [vmem:[%s222 + $0xd0] sm:$0xff] %v378
      %411 = vst [vmem:[%s222 + $0xd8] sm:$0xff] %v379
      %412 = vst [vmem:[%s222 + $0xe0] sm:$0xff] %v380
      %413 = vst [vmem:[%s222 + $0xe8] sm:$0xff] %v381
      %414 = vst [vmem:[%s222 + $0xf0] sm:$0xff] %v382
      %415 = vst [vmem:[%s222 + $0xf8] sm:$0xff] %v383
      %s416 = smul.u32 16, %s18
      %p417 = scmp.lt.s32.totalorder %s17, 1
      %s418 = scalar_select %p417, %s17, 1
      %p419 = scmp.lt.s32.totalorder %s416, 15
      %s420 = scalar_select %p419, %s416, 15
      %s421 = smul.addr %s420, 2
      %s422 = smul.addr %s418, 32
      %s423 = sadd.s32 %s421, %s422
      %s424 = smul.addr %s423, 8
      %s425 = scalar_lea.vmem %s2, %s424
      // Predicated region
      $region29: #{ca_wx_pallas.5} parent=27 // pred_check
        %p426 = pneg %p101
      $region30: #{ca_wx_pallas.5} parent=27 // pred_check_branch
        %428 = sbr.rel (%p426) target = $region32
      $region31: #{ca_wx_pallas.5} parent=27 // pred_region
        %s429 = smul.u32 16, %s18
      $region32: #{ca_wx_pallas.5} parent=27 // pred_fallthru
        _
    $region28: #{ca_wx_pallas.5} parent=5 // pred_fallthru
      _
    %p430 = scmp.le.s32.totalorder 2, %s8
    // Predicated region
    $region33: #{ca_wx_pallas.5} parent=5 // pred_check
      %p431 = pneg %p430
    $region34: #{ca_wx_pallas.5} parent=5 // pred_check_branch
      %433 = sbr.rel (%p431) target = $region36
    $region35: #{ca_wx_pallas.5} parent=5 // pred_region
      %s434 = ssub.s32 %s8, 2
      // Predicated region
      $region37: #{ca_wx_pallas.5} parent=35 // pred_check
        %p435 = pneg %p107
      $region38: #{ca_wx_pallas.5} parent=35 // pred_check_branch
        %437 = sbr.rel (%p435) target = $region40
      $region39: #{ca_wx_pallas.5} parent=35 // pred_region
        %s438 = smul.u32 16, %s20
        %p439 = scmp.lt.s32.totalorder %s19, 1
        %s440 = scalar_select %p439, %s19, 1
        %p441 = scmp.lt.s32.totalorder %s438, 15
        %s442 = scalar_select %p441, %s438, 15
        %s443 = smul.addr %s442, 2
        %s444 = smul.addr %s440, 32
        %s445 = sadd.s32 %s443, %s444
        %s446 = smul.addr %s445, 8
        %s447 = scalar_lea.vmem %s2, %s446
      $region40: #{ca_wx_pallas.5} parent=35 // pred_fallthru
        _
    $region36: #{ca_wx_pallas.5} parent=5 // pred_fallthru
      _
  $region6: #{ca_wx_pallas.5} parent=0 // loop_footer
    %s12 = sadd.s32 1, %s8
  $region7: #{ca_wx_pallas.5} parent=0 // loop_footer_branch
    %7 = sbr.rel target = $region3
  $region8: #{ca_wx_pallas.5} parent=0 // loop_exit
    _

// kernel: ca_wx_pallas.4
$region0: #{ca_wx_pallas.4}
  #allocation0 [shape = 'u32[]', space=smem, size = 0x4, offset = 0x4, fixed_abs, tag = 'smem constant byte address 0x4 - core index']
  #allocation1 [shape = 'u32[144,128]{1,0:T(1,128)}', space=vmem, size = 0x12000, scoped, tag = 'internal scratch']
  %s0 = inlined_call_operand.vmem [shape: f32[2,128], index: 0, kind: input, shape index: {}]
  %s1 = inlined_call_operand.vmem [shape: f32[2,128], index: 1, kind: input, shape index: {}]
  %s2 = inlined_call_operand.vmem [shape: f32[128,8], index: 2, kind: input, shape index: {}]
  %s3 = inlined_call_operand.vmem [shape: f32[1,8], index: 3, kind: input, shape index: {}]
  %s4 = inlined_call_operand.vmem [shape: f32[1,8], index: 4, kind: input, shape index: {}]
  %s5 = inlined_call_operand.vmem [shape: f32[8,8], index: 5, kind: input, shape index: {}]
  %s6 = inlined_call_operand.vmem [shape: f32[1,8], index: 6, kind: input, shape index: {}]
  %s7 = inlined_call_operand.vmem [shape: f32[1,8], index: 7, kind: input, shape index: {}]
  %s8 = inlined_call_operand.vmem [shape: f32[8,128], index: 8, kind: input, shape index: {}]
  %s9 = inlined_call_operand.vmem [shape: f32[2,128], index: 9, kind: output, shape index: {}]
  %s10 = sld [smem:[#allocation0]]
  $region46: #{ca_wx_pallas.4} parent=0
    _
  %s12 = ssub.s32 1, %s10
  %s13 = scalar_select 0, %s12, %s10
  // Predicated region
  $region2: #{ca_wx_pallas.4} parent=0 // pred_check
    _
  $region3: #{ca_wx_pallas.4} parent=0 // pred_check_branch
    %15 = sbr.rel (0) target = $region5
  $region4: #{ca_wx_pallas.4} parent=0 // pred_region
    _
  $region5: #{ca_wx_pallas.4} parent=0 // pred_fallthru
    _
  // Predicated region
  $region6: #{ca_wx_pallas.4} parent=0 // pred_check
    _
  $region7: #{ca_wx_pallas.4} parent=0 // pred_check_branch
    %17 = sbr.rel (0) target = $region9
  $region8: #{ca_wx_pallas.4} parent=0 // pred_region
    _
  $region9: #{ca_wx_pallas.4} parent=0 // pred_fallthru
    _
  // Predicated region
  $region10: #{ca_wx_pallas.4} parent=0 // pred_check
    _
  $region11: #{ca_wx_pallas.4} parent=0 // pred_check_branch
    %19 = sbr.rel (0) target = $region13
  $region12: #{ca_wx_pallas.4} parent=0 // pred_region
    _
  $region13: #{ca_wx_pallas.4} parent=0 // pred_fallthru
    _
  // Predicated region
  $region14: #{ca_wx_pallas.4} parent=0 // pred_check
    _
  $region15: #{ca_wx_pallas.4} parent=0 // pred_check_branch
    %21 = sbr.rel (0) target = $region17
  $region16: #{ca_wx_pallas.4} parent=0 // pred_region
    _
  $region17: #{ca_wx_pallas.4} parent=0 // pred_fallthru
    _
  // Predicated region
  $region18: #{ca_wx_pallas.4} parent=0 // pred_check
    _
  $region19: #{ca_wx_pallas.4} parent=0 // pred_check_branch
    %23 = sbr.rel (0) target = $region21
  $region20: #{ca_wx_pallas.4} parent=0 // pred_region
    _
  $region21: #{ca_wx_pallas.4} parent=0 // pred_fallthru
    _
  // Predicated region
  $region22: #{ca_wx_pallas.4} parent=0 // pred_check
    _
  $region23: #{ca_wx_pallas.4} parent=0 // pred_check_branch
    %25 = sbr.rel (0) target = $region25
  $region24: #{ca_wx_pallas.4} parent=0 // pred_region
    _
  $region25: #{ca_wx_pallas.4} parent=0 // pred_fallthru
    _
  // Predicated region
  $region26: #{ca_wx_pallas.4} parent=0 // pred_check
    _
  $region27: #{ca_wx_pallas.4} parent=0 // pred_check_branch
    %27 = sbr.rel (0) target = $region29
  $region28: #{ca_wx_pallas.4} parent=0 // pred_region
    _
  $region29: #{ca_wx_pallas.4} parent=0 // pred_fallthru
    _
  // Predicated region
  $region30: #{ca_wx_pallas.4} parent=0 // pred_check
    _
  $region31: #{ca_wx_pallas.4} parent=0 // pred_check_branch
    %29 = sbr.rel (0) target = $region33
  $region32: #{ca_wx_pallas.4} parent=0 // pred_region
    _
  $region33: #{ca_wx_pallas.4} parent=0 // pred_fallthru
    _
  // Predicated region
  $region34: #{ca_wx_pallas.4} parent=0 // pred_check
    _
  $region35: #{ca_wx_pallas.4} parent=0 // pred_check_branch
    %31 = sbr.rel (0) target = $region37
  $region36: #{ca_wx_pallas.4} parent=0 // pred_region
    _
  $region37: #{ca_wx_pallas.4} parent=0 // pred_fallthru
    _
  %v32 = vld [vmem:[%s0] sm:$0x3]
  %v33 = vld [vmem:[%s2] sm:$0xff]
  %v34 = vld [vmem:[%s2 + $0x8] sm:$0xff]
  %v35 = vld [vmem:[%s2 + $0x10] sm:$0xff]
  %v36 = vld [vmem:[%s2 + $0x18] sm:$0xff]
  %v37 = vld [vmem:[%s2 + $0x20] sm:$0xff]
  %v38 = vld [vmem:[%s2 + $0x28] sm:$0xff]
  %v39 = vld [vmem:[%s2 + $0x30] sm:$0xff]
  %v40 = vld [vmem:[%s2 + $0x38] sm:$0xff]
  %v41 = vld [vmem:[%s2 + $0x40] sm:$0xff]
  %v42 = vld [vmem:[%s2 + $0x48] sm:$0xff]
  %v43 = vld [vmem:[%s2 + $0x50] sm:$0xff]
  %v44 = vld [vmem:[%s2 + $0x58] sm:$0xff]
  %v45 = vld [vmem:[%s2 + $0x60] sm:$0xff]
  %v46 = vld [vmem:[%s2 + $0x68] sm:$0xff]
  %v47 = vld [vmem:[%s2 + $0x70] sm:$0xff]
  %v48 = vld [vmem:[%s2 + $0x78] sm:$0xff]
  %49 = vmatprep.subr.mxu0 0.0
  %50 = vmatpush1.msra.mxu0 %v48
  %51 = vmatprep.subr.mxu0 0.0
  %52 = vmatpush1.msra.mxu0 %v47
  %53 = vmatprep.subr.mxu0 0.0
  %54 = vmatpush1.msra.mxu0 %v46
  %55 = vmatprep.subr.mxu0 0.0
  %56 = vmatpush1.msra.mxu0 %v45
  %57 = vmatprep.subr.mxu0 0.0
  %58 = vmatpush1.msra.mxu0 %v44
  %59 = vmatprep.subr.mxu0 0.0
  %60 = vmatpush1.msra.mxu0 %v43
  %61 = vmatprep.subr.mxu0 0.0
  %62 = vmatpush1.msra.mxu0 %v42
  %63 = vmatprep.subr.mxu0 0.0
  %64 = vmatpush1.msra.mxu0 %v41
  %65 = vmatprep.subr.mxu0 0.0
  %66 = vmatpush1.msra.mxu0 %v40
  %67 = vmatprep.subr.mxu0 0.0
  %68 = vmatpush1.msra.mxu0 %v39
  %69 = vmatprep.subr.mxu0 0.0
  %70 = vmatpush1.msra.mxu0 %v38
  %71 = vmatprep.subr.mxu0 0.0
  %72 = vmatpush1.msra.mxu0 %v37
  %73 = vmatprep.subr.mxu0 0.0
  %74 = vmatpush1.msra.mxu0 %v36
  %75 = vmatprep.subr.mxu0 0.0
  %76 = vmatpush1.msra.mxu0 %v35
  %77 = vmatprep.subr.mxu0 0.0
  %78 = vmatpush1.msra.mxu0 %v34
  %79 = vmatprep.subr.mxu0 0.0
  %80 = vmatpush1.msra.mxu0 %v33
  %81 = vmatprep.subr.mxu0 0.0
  %82 = vmatpush2.msra.mxu0 0.0
  %83 = vmatprep.subr.mxu0 0.0
  %84 = vmatpush2.msra.mxu0 0.0
  %85 = vmatprep.subr.mxu0 0.0
  %86 = vmatpush2.msra.mxu0 0.0
  %87 = vmatprep.subr.mxu0 0.0
  %88 = vmatpush2.msra.mxu0 0.0
  %89 = vmatprep.subr.mxu0 0.0
  %90 = vmatpush2.msra.mxu0 0.0
  %91 = vmatprep.subr.mxu0 0.0
  %92 = vmatpush2.msra.mxu0 0.0
  %93 = vmatprep.subr.mxu0 0.0
  %94 = vmatpush2.msra.mxu0 0.0
  %95 = vmatprep.subr.mxu0 0.0
  %96 = vmatpush2.msra.mxu0 0.0
  %97 = vmatprep.subr.mxu0 0.0
  %98 = vmatpush2.msra.mxu0 0.0
  %99 = vmatprep.subr.mxu0 0.0
  %100 = vmatpush2.msra.mxu0 0.0
  %101 = vmatprep.subr.mxu0 0.0
  %102 = vmatpush2.msra.mxu0 0.0
  %103 = vmatprep.subr.mxu0 0.0
  %104 = vmatpush2.msra.mxu0 0.0
  %105 = vmatprep.subr.mxu0 0.0
  %106 = vmatpush2.msra.mxu0 0.0
  %107 = vmatprep.subr.mxu0 0.0
  %108 = vmatpush2.msra.mxu0 0.0
  %109 = vmatprep.subr.mxu0 0.0
  %110 = vmatpush2.msra.mxu0 0.0
  %111 = vmatprep.subr.mxu0 0.0
  %112 = vmatpush2.msra.mxu0 0.0
  %113 = vmatprep.mubr.f32.mxu0 0.0
  %114 = vmatmul.mubr.f32.gmra.mxu0 %v32
  %v115 = vpop.f32.mrf.mxu0
  %v116 = vadd.f32 0.0, %v115
  %v117 = vpop.f32.mrf.mxu0
  %118 = vdwg.mxu0
  %v119 = vmax.f32 %v116, 0.0
  %v120 = vld [vmem:[%s3] sm:$0x1]
  %v122 = vlaneseq
  %v123 = vshrl.u32 %v122, 7
  %v124 = vsub.s32 0, %v123
  %v125 = vrot.slane %v120, %v124
  %v127 = vmul.f32 %v119, %v125
  %v128 = vld [vmem:[%s4] sm:$0x1]
  %v130 = vlaneseq
  %v131 = vshrl.u32 %v130, 7
  %v132 = vsub.s32 0, %v131
  %v133 = vrot.slane %v128, %v132
  %v135 = vadd.f32 %v127, %v133
  %v136 = vmax.f32 %v135, 0.0
  %v137 = vld [vmem:[%s5] sm:$0xff]
  %vm138 = vcmask 64512
  %v140 = vsel %vm138, %v136, 0
  %142 = vmatprep.subr.mxu0 0.0
  %143 = vmatpush1.msra.mxu0 0.0
  %144 = vmatprep.subr.mxu0 0.0
  %145 = vmatpush1.msra.mxu0 0.0
  %146 = vmatprep.subr.mxu0 0.0
  %147 = vmatpush1.msra.mxu0 0.0
  %148 = vmatprep.subr.mxu0 0.0
  %149 = vmatpush1.msra.mxu0 0.0
  %150 = vmatprep.subr.mxu0 0.0
  %151 = vmatpush1.msra.mxu0 0.0
  %152 = vmatprep.subr.mxu0 0.0
  %153 = vmatpush1.msra.mxu0 0.0
  %154 = vmatprep.subr.mxu0 0.0
  %155 = vmatpush1.msra.mxu0 0.0
  %156 = vmatprep.subr.mxu0 0.0
  %157 = vmatpush1.msra.mxu0 0.0
  %158 = vmatprep.subr.mxu0 0.0
  %159 = vmatpush1.msra.mxu0 0.0
  %160 = vmatprep.subr.mxu0 0.0
  %161 = vmatpush1.msra.mxu0 0.0
  %162 = vmatprep.subr.mxu0 0.0
  %163 = vmatpush1.msra.mxu0 0.0
  %164 = vmatprep.subr.mxu0 0.0
  %165 = vmatpush1.msra.mxu0 0.0
  %166 = vmatprep.subr.mxu0 0.0
  %167 = vmatpush1.msra.mxu0 0.0
  %168 = vmatprep.subr.mxu0 0.0
  %169 = vmatpush1.msra.mxu0 0.0
  %170 = vmatprep.subr.mxu0 0.0
  %171 = vmatpush1.msra.mxu0 0.0
  %172 = vmatprep.subr.mxu0 0.0
  %173 = vmatpush1.msra.mxu0 %v137
  %174 = vmatprep.subr.mxu0 0.0
  %175 = vmatpush2.msra.mxu0 0.0
  %176 = vmatprep.subr.mxu0 0.0
  %177 = vmatpush2.msra.mxu0 0.0
  %178 = vmatprep.subr.mxu0 0.0
  %179 = vmatpush2.msra.mxu0 0.0
  %180 = vmatprep.subr.mxu0 0.0
  %181 = vmatpush2.msra.mxu0 0.0
  %182 = vmatprep.subr.mxu0 0.0
  %183 = vmatpush2.msra.mxu0 0.0
  %184 = vmatprep.subr.mxu0 0.0
  %185 = vmatpush2.msra.mxu0 0.0
  %186 = vmatprep.subr.mxu0 0.0
  %187 = vmatpush2.msra.mxu0 0.0
  %188 = vmatprep.subr.mxu0 0.0
  %189 = vmatpush2.msra.mxu0 0.0
  %190 = vmatprep.subr.mxu0 0.0
  %191 = vmatpush2.msra.mxu0 0.0
  %192 = vmatprep.subr.mxu0 0.0
  %193 = vmatpush2.msra.mxu0 0.0
  %194 = vmatprep.subr.mxu0 0.0
  %195 = vmatpush2.msra.mxu0 0.0
  %196 = vmatprep.subr.mxu0 0.0
  %197 = vmatpush2.msra.mxu0 0.0
  %198 = vmatprep.subr.mxu0 0.0
  %199 = vmatpush2.msra.mxu0 0.0
  %200 = vmatprep.subr.mxu0 0.0
  %201 = vmatpush2.msra.mxu0 0.0
  %202 = vmatprep.subr.mxu0 0.0
  %203 = vmatpush2.msra.mxu0 0.0
  %204 = vmatprep.subr.mxu0 0.0
  %205 = vmatpush2.msra.mxu0 0.0
  %206 = vmatprep.mubr.f32.mxu0 0.0
  %207 = vmatmul.mubr.f32.gmra.mxu0 %v140
  %v208 = vpop.f32.mrf.mxu0
  %v209 = vadd.f32 0.0, %v208
  %v210 = vpop.f32.mrf.mxu0
  %211 = vdwg.mxu0
  %v212 = vld [vmem:[%s6] sm:$0x1]
  %v214 = vlaneseq
  %v215 = vshrl.u32 %v214, 7
  %v216 = vsub.s32 0, %v215
  %v217 = vrot.slane %v212, %v216
  %v219 = vmul.f32 %v209, %v217
  %v220 = vld [vmem:[%s7] sm:$0x1]
  %v222 = vlaneseq
  %v223 = vshrl.u32 %v222, 7
  %v224 = vsub.s32 0, %v223
  %v225 = vrot.slane %v220, %v224
  %v227 = vadd.f32 %v219, %v225
  %v228 = vmax.f32 %v227, 0.0
  %v229 = vld [vmem:[%s8] sm:$0xff]
  %v230 = vld [vmem:[%s1] sm:$0x3]
  %231 = vmatprep.subr.mxu0 0.0
  %232 = vmatpush1.msra.mxu0 %v48
  %233 = vmatprep.subr.mxu0 0.0
  %234 = vmatpush1.msra.mxu0 %v47
  %235 = vmatprep.subr.mxu0 0.0
  %236 = vmatpush1.msra.mxu0 %v46
  %237 = vmatprep.subr.mxu0 0.0
  %238 = vmatpush1.msra.mxu0 %v45
  %239 = vmatprep.subr.mxu0 0.0
  %240 = vmatpush1.msra.mxu0 %v44
  %241 = vmatprep.subr.mxu0 0.0
  %242 = vmatpush1.msra.mxu0 %v43
  %243 = vmatprep.subr.mxu0 0.0
  %244 = vmatpush1.msra.mxu0 %v42
  %245 = vmatprep.subr.mxu0 0.0
  %246 = vmatpush1.msra.mxu0 %v41
  %247 = vmatprep.subr.mxu0 0.0
  %248 = vmatpush1.msra.mxu0 %v40
  %249 = vmatprep.subr.mxu0 0.0
  %250 = vmatpush1.msra.mxu0 %v39
  %251 = vmatprep.subr.mxu0 0.0
  %252 = vmatpush1.msra.mxu0 %v38
  %253 = vmatprep.subr.mxu0 0.0
  %254 = vmatpush1.msra.mxu0 %v37
  %255 = vmatprep.subr.mxu0 0.0
  %256 = vmatpush1.msra.mxu0 %v36
  %257 = vmatprep.subr.mxu0 0.0
  %258 = vmatpush1.msra.mxu0 %v35
  %259 = vmatprep.subr.mxu0 0.0
  %260 = vmatpush1.msra.mxu0 %v34
  %261 = vmatprep.subr.mxu0 0.0
  %262 = vmatpush1.msra.mxu0 %v33
  %263 = vmatprep.subr.mxu0 0.0
  %264 = vmatpush2.msra.mxu0 0.0
  %265 = vmatprep.subr.mxu0 0.0
  %266 = vmatpush2.msra.mxu0 0.0
  %267 = vmatprep.subr.mxu0 0.0
  %268 = vmatpush2.msra.mxu0 0.0
  %269 = vmatprep.subr.mxu0 0.0
  %270 = vmatpush2.msra.mxu0 0.0
  %271 = vmatprep.subr.mxu0 0.0
  %272 = vmatpush2.msra.mxu0 0.0
  %273 = vmatprep.subr.mxu0 0.0
  %274 = vmatpush2.msra.mxu0 0.0
  %275 = vmatprep.subr.mxu0 0.0
  %276 = vmatpush2.msra.mxu0 0.0
  %277 = vmatprep.subr.mxu0 0.0
  %278 = vmatpush2.msra.mxu0 0.0
  %279 = vmatprep.subr.mxu0 0.0
  %280 = vmatpush2.msra.mxu0 0.0
  %281 = vmatprep.subr.mxu0 0.0
  %282 = vmatpush2.msra.mxu0 0.0
  %283 = vmatprep.subr.mxu0 0.0
  %284 = vmatpush2.msra.mxu0 0.0
  %285 = vmatprep.subr.mxu0 0.0
  %286 = vmatpush2.msra.mxu0 0.0
  %287 = vmatprep.subr.mxu0 0.0
  %288 = vmatpush2.msra.mxu0 0.0
  %289 = vmatprep.subr.mxu0 0.0
  %290 = vmatpush2.msra.mxu0 0.0
  %291 = vmatprep.subr.mxu0 0.0
  %292 = vmatpush2.msra.mxu0 0.0
  %293 = vmatprep.subr.mxu0 0.0
  %294 = vmatpush2.msra.mxu0 0.0
  %295 = vmatprep.mubr.f32.mxu0 0.0
  %296 = vmatmul.mubr.f32.gmra.mxu0 %v230
  %v297 = vpop.f32.mrf.mxu0
  %v298 = vadd.f32 0.0, %v297
  %v299 = vpop.f32.mrf.mxu0
  %300 = vdwg.mxu0
  %v301 = vmax.f32 %v298, 0.0
  %v302 = vmul.f32 %v301, %v125
  %v303 = vadd.f32 %v302, %v133
  %v304 = vmax.f32 %v303, 0.0
  %v306 = vsel %vm138, %v304, 0
  %308 = vmatprep.subr.mxu0 0.0
  %309 = vmatpush1.msra.mxu0 0.0
  %310 = vmatprep.subr.mxu0 0.0
  %311 = vmatpush1.msra.mxu0 0.0
  %312 = vmatprep.subr.mxu0 0.0
  %313 = vmatpush1.msra.mxu0 0.0
  %314 = vmatprep.subr.mxu0 0.0
  %315 = vmatpush1.msra.mxu0 0.0
  %316 = vmatprep.subr.mxu0 0.0
  %317 = vmatpush1.msra.mxu0 0.0
  %318 = vmatprep.subr.mxu0 0.0
  %319 = vmatpush1.msra.mxu0 0.0
  %320 = vmatprep.subr.mxu0 0.0
  %321 = vmatpush1.msra.mxu0 0.0
  %322 = vmatprep.subr.mxu0 0.0
  %323 = vmatpush1.msra.mxu0 0.0
  %324 = vmatprep.subr.mxu0 0.0
  %325 = vmatpush1.msra.mxu0 0.0
  %326 = vmatprep.subr.mxu0 0.0
  %327 = vmatpush1.msra.mxu0 0.0
  %328 = vmatprep.subr.mxu0 0.0
  %329 = vmatpush1.msra.mxu0 0.0
  %330 = vmatprep.subr.mxu0 0.0
  %331 = vmatpush1.msra.mxu0 0.0
  %332 = vmatprep.subr.mxu0 0.0
  %333 = vmatpush1.msra.mxu0 0.0
  %334 = vmatprep.subr.mxu0 0.0
  %335 = vmatpush1.msra.mxu0 0.0
  %336 = vmatprep.subr.mxu0 0.0
  %337 = vmatpush1.msra.mxu0 0.0
  %338 = vmatprep.subr.mxu0 0.0
  %339 = vmatpush1.msra.mxu0 %v137
  %340 = vmatprep.subr.mxu0 0.0
  %341 = vmatpush2.msra.mxu0 0.0
  %342 = vmatprep.subr.mxu0 0.0
  %343 = vmatpush2.msra.mxu0 0.0
  %344 = vmatprep.subr.mxu0 0.0
  %345 = vmatpush2.msra.mxu0 0.0
  %346 = vmatprep.subr.mxu0 0.0
  %347 = vmatpush2.msra.mxu0 0.0
  %348 = vmatprep.subr.mxu0 0.0
  %349 = vmatpush2.msra.mxu0 0.0
  %350 = vmatprep.subr.mxu0 0.0
  %351 = vmatpush2.msra.mxu0 0.0
  %352 = vmatprep.subr.mxu0 0.0
  %353 = vmatpush2.msra.mxu0 0.0
  %354 = vmatprep.subr.mxu0 0.0
  %355 = vmatpush2.msra.mxu0 0.0
  %356 = vmatprep.subr.mxu0 0.0
  %357 = vmatpush2.msra.mxu0 0.0
  %358 = vmatprep.subr.mxu0 0.0
  %359 = vmatpush2.msra.mxu0 0.0
  %360 = vmatprep.subr.mxu0 0.0
  %361 = vmatpush2.msra.mxu0 0.0
  %362 = vmatprep.subr.mxu0 0.0
  %363 = vmatpush2.msra.mxu0 0.0
  %364 = vmatprep.subr.mxu0 0.0
  %365 = vmatpush2.msra.mxu0 0.0
  %366 = vmatprep.subr.mxu0 0.0
  %367 = vmatpush2.msra.mxu0 0.0
  %368 = vmatprep.subr.mxu0 0.0
  %369 = vmatpush2.msra.mxu0 0.0
  %370 = vmatprep.subr.mxu0 0.0
  %371 = vmatpush2.msra.mxu0 0.0
  %372 = vmatprep.mubr.f32.mxu0 0.0
  %373 = vmatmul.mubr.f32.gmra.mxu0 %v306
  %v374 = vpop.f32.mrf.mxu0
  %v375 = vadd.f32 0.0, %v374
  %v376 = vpop.f32.mrf.mxu0
  %377 = vdwg.mxu0
  %v378 = vmul.f32 %v375, %v217
  %v379 = vadd.f32 %v378, %v225
  %v380 = vmax.f32 %v379, 0.0
  %v382 = vsel %vm138, %v380, 0
  %384 = vmatprep.subr.mxu0 0.0
  %385 = vmatpush1.msra.mxu0 0.0
  %386 = vmatprep.subr.mxu0 0.0
  %387 = vmatpush1.msra.mxu0 0.0
  %388 = vmatprep.subr.mxu0 0.0
  %389 = vmatpush1.msra.mxu0 0.0
  %390 = vmatprep.subr.mxu0 0.0
  %391 = vmatpush1.msra.mxu0 0.0
  %392 = vmatprep.subr.mxu0 0.0
  %393 = vmatpush1.msra.mxu0 0.0
  %394 = vmatprep.subr.mxu0 0.0
  %395 = vmatpush1.msra.mxu0 0.0
  %396 = vmatprep.subr.mxu0 0.0
  %397 = vmatpush1.msra.mxu0 0.0
  %398 = vmatprep.subr.mxu0 0.0
  %399 = vmatpush1.msra.mxu0 0.0
  %400 = vmatprep.subr.mxu0 0.0
  %401 = vmatpush1.msra.mxu0 0.0
  %402 = vmatprep.subr.mxu0 0.0
  %403 = vmatpush1.msra.mxu0 0.0
  %404 = vmatprep.subr.mxu0 0.0
  %405 = vmatpush1.msra.mxu0 0.0
  %406 = vmatprep.subr.mxu0 0.0
  %407 = vmatpush1.msra.mxu0 0.0
  %408 = vmatprep.subr.mxu0 0.0
  %409 = vmatpush1.msra.mxu0 0.0
  %410 = vmatprep.subr.mxu0 0.0
  %411 = vmatpush1.msra.mxu0 0.0
  %412 = vmatprep.subr.mxu0 0.0
  %413 = vmatpush1.msra.mxu0 0.0
  %414 = vmatprep.subr.mxu0 0.0
  %415 = vmatpush1.msra.mxu0 %v229
  %416 = vmatprep.subr.mxu0 0.0
  %417 = vmatpush2.msra.mxu0 0.0
  %418 = vmatprep.subr.mxu0 0.0
  %419 = vmatpush2.msra.mxu0 0.0
  %420 = vmatprep.subr.mxu0 0.0
  %421 = vmatpush2.msra.mxu0 0.0
  %422 = vmatprep.subr.mxu0 0.0
  %423 = vmatpush2.msra.mxu0 0.0
  %424 = vmatprep.subr.mxu0 0.0
  %425 = vmatpush2.msra.mxu0 0.0
  %426 = vmatprep.subr.mxu0 0.0
  %427 = vmatpush2.msra.mxu0 0.0
  %428 = vmatprep.subr.mxu0 0.0
  %429 = vmatpush2.msra.mxu0 0.0
  %430 = vmatprep.subr.mxu0 0.0
  %431 = vmatpush2.msra.mxu0 0.0
  %432 = vmatprep.subr.mxu0 0.0
  %433 = vmatpush2.msra.mxu0 0.0
  %434 = vmatprep.subr.mxu0 0.0
  %435 = vmatpush2.msra.mxu0 0.0
  %436 = vmatprep.subr.mxu0 0.0
  %437 = vmatpush2.msra.mxu0 0.0
  %438 = vmatprep.subr.mxu0 0.0
  %439 = vmatpush2.msra.mxu0 0.0
  %440 = vmatprep.subr.mxu0 0.0
  %441 = vmatpush2.msra.mxu0 0.0
  %442 = vmatprep.subr.mxu0 0.0
  %443 = vmatpush2.msra.mxu0 0.0
  %444 = vmatprep.subr.mxu0 0.0
  %445 = vmatpush2.msra.mxu0 0.0
  %446 = vmatprep.subr.mxu0 0.0
  %447 = vmatpush2.msra.mxu0 0.0
  %448 = vmatprep.mubr.f32.mxu0 0.0
  %449 = vmatmul.mubr.f32.gmra.mxu0 %v382
  %v450 = vpop.f32.mrf.mxu0
  %v451 = vadd.f32 0.0, %v450
  %v452 = vpop.f32.mrf.mxu0
  %453 = vdwg.mxu0
  %v455 = vsel %vm138, %v228, 0
  %457 = vmatprep.subr.mxu0 0.0
  %458 = vmatpush1.msra.mxu0 0.0
  %459 = vmatprep.subr.mxu0 0.0
  %460 = vmatpush1.msra.mxu0 0.0
  %461 = vmatprep.subr.mxu0 0.0
  %462 = vmatpush1.msra.mxu0 0.0
  %463 = vmatprep.subr.mxu0 0.0
  %464 = vmatpush1.msra.mxu0 0.0
  %465 = vmatprep.subr.mxu0 0.0
  %466 = vmatpush1.msra.mxu0 0.0
  %467 = vmatprep.subr.mxu0 0.0
  %468 = vmatpush1.msra.mxu0 0.0
  %469 = vmatprep.subr.mxu0 0.0
  %470 = vmatpush1.msra.mxu0 0.0
  %471 = vmatprep.subr.mxu0 0.0
  %472 = vmatpush1.msra.mxu0 0.0
  %473 = vmatprep.subr.mxu0 0.0
  %474 = vmatpush1.msra.mxu0 0.0
  %475 = vmatprep.subr.mxu0 0.0
  %476 = vmatpush1.msra.mxu0 0.0
  %477 = vmatprep.subr.mxu0 0.0
  %478 = vmatpush1.msra.mxu0 0.0
  %479 = vmatprep.subr.mxu0 0.0
  %480 = vmatpush1.msra.mxu0 0.0
  %481 = vmatprep.subr.mxu0 0.0
  %482 = vmatpush1.msra.mxu0 0.0
  %483 = vmatprep.subr.mxu0 0.0
  %484 = vmatpush1.msra.mxu0 0.0
  %485 = vmatprep.subr.mxu0 0.0
  %486 = vmatpush1.msra.mxu0 0.0
  %487 = vmatprep.subr.mxu0 0.0
  %488 = vmatpush1.msra.mxu0 %v229
  %489 = vmatprep.subr.mxu0 0.0
  %490 = vmatpush2.msra.mxu0 0.0
  %491 = vmatprep.subr.mxu0 0.0
  %492 = vmatpush2.msra.mxu0 0.0
  %493 = vmatprep.subr.mxu0 0.0
  %494 = vmatpush2.msra.mxu0 0.0
  %495 = vmatprep.subr.mxu0 0.0
  %496 = vmatpush2.msra.mxu0 0.0
  %497 = vmatprep.subr.mxu0 0.0
  %498 = vmatpush2.msra.mxu0 0.0
  %499 = vmatprep.subr.mxu0 0.0
  %500 = vmatpush2.msra.mxu0 0.0
  %501 = vmatprep.subr.mxu0 0.0
  %502 = vmatpush2.msra.mxu0 0.0
  %503 = vmatprep.subr.mxu0 0.0
  %504 = vmatpush2.msra.mxu0 0.0
  %505 = vmatprep.subr.mxu0 0.0
  %506 = vmatpush2.msra.mxu0 0.0
  %507 = vmatprep.subr.mxu0 0.0
  %508 = vmatpush2.msra.mxu0 0.0
  %509 = vmatprep.subr.mxu0 0.0
  %510 = vmatpush2.msra.mxu0 0.0
  %511 = vmatprep.subr.mxu0 0.0
  %512 = vmatpush2.msra.mxu0 0.0
  %513 = vmatprep.subr.mxu0 0.0
  %514 = vmatpush2.msra.mxu0 0.0
  %515 = vmatprep.subr.mxu0 0.0
  %516 = vmatpush2.msra.mxu0 0.0
  %517 = vmatprep.subr.mxu0 0.0
  %518 = vmatpush2.msra.mxu0 0.0
  %519 = vmatprep.subr.mxu0 0.0
  %520 = vmatpush2.msra.mxu0 0.0
  %521 = vmatprep.mubr.f32.mxu0 0.0
  %522 = vmatmul.mubr.f32.gmra.mxu0 %v455
  %v523 = vpop.f32.mrf.mxu0
  %v524 = vadd.f32 %v451, %v523
  %v525 = vpop.f32.mrf.mxu0
  %526 = vdwg.mxu0
  %vm527 = vcmask 1041408
  %v528 = vsel %vm527, %v524, -inf
  %529 = vmax.xlane.f32.xlu0 %v528
  %v530 = vpop.xlane.xlu0 %529
  %v531 = vsub.f32 %v524, %v530
  %v532 = vmul.f32 %v531, 1.442695
  %v533 = vpow.pop %v532
  %v534 = vsel %vm527, %v533, 0.0
  %535 = vadd.xlane.f32.xlu0 %v534
  %v536 = vpop.xlane.xlu0 %535
  %v537 = vrcp.pop %v536
  %v538 = vmul.f32 %v533, %v537
  %539 = vst [vmem:[%s9] sm:$0x3] %v538
  // Predicated region
  $region38: #{ca_wx_pallas.4} parent=0 // pred_check
    _
  $region39: #{ca_wx_pallas.4} parent=0 // pred_check_branch
    %541 = sbr.rel (0) target = $region41
  $region40: #{ca_wx_pallas.4} parent=0 // pred_region
    _
  $region41: #{ca_wx_pallas.4} parent=0 // pred_fallthru
    _
  // Predicated region
  $region42: #{ca_wx_pallas.4} parent=0 // pred_check
    _
  $region43: #{ca_wx_pallas.4} parent=0 // pred_check_branch
    %543 = sbr.rel (0) target = $region45
  $region44: #{ca_wx_pallas.4} parent=0 // pred_region
    _
  $region45: #{ca_wx_pallas.4} parent=0 // pred_fallthru
    _

</llo_original>
